<compile_context>
chip_gen: v5e
topology: v5e:2x2
jax: 0.10.0
libtpu: 0.0.40
codegen_flags: <defaults>
</compile_context>

<pallas_src>
import functools

import jax
import jax.numpy as jnp
from jax import lax
from jax.experimental import pallas as pl
from jax.experimental.pallas import tpu as pltpu

MASK_NEG = -1e30   # additive causal-mask bias; exp() underflows to exactly 0


# ----------------------------------------------------------------------------
# shared math helpers (kernel + pure-JAX reference)
# ----------------------------------------------------------------------------
def _layer_norm(v, w, b, eps=1e-5):
    mu = jnp.mean(v, axis=-1, keepdims=True)
    var = jnp.mean(jnp.square(v - mu), axis=-1, keepdims=True)
    return (v - mu) * lax.rsqrt(var + eps) * w + b


def _gelu_tanh(v):
    # tanh-approximate GELU (see TODO above re: exact erf form)
    return 0.5 * v * (1.0 + jnp.tanh(0.7978845608028654 * (v + 0.044715 * v * v * v)))


# ----------------------------------------------------------------------------
# Pallas kernel: one grid step == one transformer block
# ----------------------------------------------------------------------------
def decoder_lm_kernel(idx_ref, tok_ref, pemb_ref,
                      ln1w_ref, ln1b_ref, wqkv_ref, bqkv_ref,
                      wproj_ref, bproj_ref, ln2w_ref, ln2b_ref,
                      w1_ref, b1_ref, w2_ref, b2_ref,
                      wlm_ref, blm_ref, o_ref, x_ref,
                      *, B, T, C, H, V, n_blocks):
    l = pl.program_id(0)
    N = B * T
    hs = C // H
    f32 = jnp.float32
    bf16 = jnp.bfloat16

    # ---- first step: embeddings into the persistent residual-stream scratch
    @pl.when(l == 0)
    def _():
        # token embedding as one-hot @ table (MXU-friendly gather at V=128)
        tok_oh = (idx_ref[...] ==
                  lax.broadcasted_iota(jnp.int32, (N, V), 1)).astype(f32)
        x0 = jnp.dot(tok_oh, tok_ref[...], preferred_element_type=f32)    # (N, C)
        # positions are statically tile(arange(T), B): just tile the table
        pos = jnp.concatenate([pemb_ref[...]] * B, axis=0)                # (N, C)
        x_ref[...] = x0 + pos

    x = x_ref[...]                                                        # (N, C) f32

    # ---- x = ln1(x); x = x + mha(x) -----------------------------------------
    x = _layer_norm(x, ln1w_ref[0], ln1b_ref[0])

    # fused QKV projection (bf16 operands, f32 accumulation); 1/sqrt(C) is
    # already folded into the Q slice of the packed weights/bias.
    qkv = jnp.dot(x.astype(bf16), wqkv_ref[0],
                  preferred_element_type=f32) + bqkv_ref[0]               # (N, 3C)
    qkv = qkv.reshape(B, T, 3 * C)

    # head-batched attention: fold (H, B) into ONE batch dim of size H*B.
    # (lane-slice + leading-dim concat is the (B,T,H,hs)->(H*B,T,hs) relayout
    #  expressed with ops that lower robustly in Mosaic.)
    q = jnp.concatenate([qkv[:, :, h * hs:(h + 1) * hs] for h in range(H)], axis=0)
    k = jnp.concatenate([qkv[:, :, C + h * hs:C + (h + 1) * hs] for h in range(H)], axis=0)
    v = jnp.concatenate([qkv[:, :, 2 * C + h * hs:2 * C + (h + 1) * hs] for h in range(H)], axis=0)

    # (T, T) additive causal bias, broadcast over all heads/batches
    rows = lax.broadcasted_iota(jnp.int32, (T, T), 0)
    cols = lax.broadcasted_iota(jnp.int32, (T, T), 1)
    mask_bias = jnp.where(cols <= rows, 0.0, MASK_NEG).astype(f32)        # (T, T)

    s = jnp.einsum('bqd,bkd->bqk', q.astype(bf16), k.astype(bf16),
                   preferred_element_type=f32)                            # (H*B, T, T)
    s = s + mask_bias
    s = jnp.exp(s - jnp.max(s, axis=-1, keepdims=True))
    p = s * pl.reciprocal(jnp.sum(s, axis=-1, keepdims=True), approx=True)
    ho = jnp.einsum('bqk,bkd->bqd', p.astype(bf16), v.astype(bf16),
                    preferred_element_type=f32)                           # (H*B, T, hs)

    # merge heads back onto the lane dim and do ONE (N,C)@(C,C) projection
    y = jnp.concatenate([ho[h * B:(h + 1) * B] for h in range(H)], axis=-1)   # (B,T,C)
    y = y.reshape(N, C)
    att = jnp.dot(y.astype(bf16), wproj_ref[0],
                  preferred_element_type=f32) + bproj_ref[0]
    x = x + att

    # ---- x = ln2(x); x = x + ffwd(x) ------------------------------------------
    x = _layer_norm(x, ln2w_ref[0], ln2b_ref[0])
    h1 = _gelu_tanh(jnp.dot(x.astype(bf16), w1_ref[0],
                            preferred_element_type=f32) + b1_ref[0])      # (N, 4C)
    x = x + jnp.dot(h1.astype(bf16), w2_ref[0],
                    preferred_element_type=f32) + b2_ref[0]
    x_ref[...] = x

    # ---- last step: lm_head, lane-dense (N, V=128) store -----------------------
    @pl.when(l == n_blocks - 1)
    def _():
        logits = jnp.dot(x.astype(bf16), wlm_ref[...],
                         preferred_element_type=f32) + blm_ref[...]
        o_ref[...] = logits.astype(o_ref.dtype)


def decoder_lm_forward(idx, packed, *, B, T, C, H, V, n_blocks):
    """idx: (B, T) int32 token ids -> logits (B, T, V) float32."""
    N = B * T
    idx_flat = idx.reshape(N, 1).astype(jnp.int32)

    def full_spec(a):                 # resident across all layer steps
        nd = a.ndim
        return pl.BlockSpec(a.shape, lambda l, _nd=nd: (0,) * _nd)

    def layer_spec(a):                # one layer's slice per grid step
        nd = a.ndim
        return pl.BlockSpec((1,) + a.shape[1:],
                            lambda l, _nd=nd: (l,) + (0,) * (_nd - 1))

    layer_names = ('ln1w', 'ln1b', 'wqkv', 'bqkv', 'wproj', 'bproj',
                   'ln2w', 'ln2b', 'w1', 'b1', 'w2', 'b2')
    args = (idx_flat, packed['tok'], packed['pos'],
            *[packed[n] for n in layer_names],
            packed['wlm'], packed['blm'])
    in_specs = ([full_spec(idx_flat), full_spec(packed['tok']), full_spec(packed['pos'])]
                + [layer_spec(packed[n]) for n in layer_names]
                + [full_spec(packed['wlm']), full_spec(packed['blm'])])

    kernel = functools.partial(decoder_lm_kernel,
                               B=B, T=T, C=C, H=H, V=V, n_blocks=n_blocks)
    logits_flat = pl.pallas_call(
        kernel,
        out_shape=jax.ShapeDtypeStruct((N, V), jnp.float32),
        grid_spec=pltpu.PrefetchScalarGridSpec(
            num_scalar_prefetch=0,
            grid=(n_blocks,),
            in_specs=in_specs,
            # same output block every step -> resident accumulator, written at
            # the final layer step only
            out_specs=pl.BlockSpec((N, V), lambda l: (0, 0)),
            # persistent residual stream across layer steps
            scratch_shapes=[pltpu.VMEM((N, C), jnp.float32)],
        ),
        compiler_params=pltpu.CompilerParams(
            dimension_semantics=("arbitrary",),       # layers are sequential
            # explicit VMEM budget (ample here; re-derive when scaling, esp. v7x)
            vmem_limit_bytes=32 * 1024 * 1024,
        ),
    )(*args)
    return logits_flat.reshape(B, T, V)


# ----------------------------------------------------------------------------
# parameter construction: raw (PyTorch-layout) params + packing for the kernel
# ----------------------------------------------------------------------------
def init_params(key, *, V, C, H, T, L):
    hs = C // H
    keys = iter(jax.random.split(key, 16 * L + 8))
    nrm = lambda shape, s: (s * jax.random.normal(next(keys), shape)).astype(jnp.float32)

    blocks = []
    tok_table = nrm((V, C), 0.02)
    pos_table = nrm((T, C), 0.02)
    for _ in range(L):
        blocks.append(dict(
            ln1_w=1.0 + nrm((C,), 0.1), ln1_b=nrm((C,), 0.1),
            wq=nrm((H, hs, C), 0.08), bq=nrm((H, hs), 0.02),   # nn.Linear (out, in)
            wk=nrm((H, hs, C), 0.08), bk=nrm((H, hs), 0.02),
            wv=nrm((H, hs, C), 0.08), bv=nrm((H, hs), 0.02),
            wp=nrm((C, C), 0.08), bp=nrm((C,), 0.02),
            ln2_w=1.0 + nrm((C,), 0.1), ln2_b=nrm((C,), 0.1),
            w1=nrm((4 * C, C), 0.08), b1=nrm((4 * C,), 0.02),
            w2=nrm((C, 4 * C), 0.08), b2=nrm((C,), 0.02),
        ))
    return dict(tok=tok_table, pos=pos_table, blocks=blocks,
                wlm=nrm((V, C), 0.08), blm=nrm((V,), 0.02))


def pack_params(p, *, C, H):
    """Pack PyTorch-layout params into kernel layout: x @ W orientation, fused
    QKV with the 1/sqrt(C) score scale folded into Q, per-layer stacking, and
    bf16 storage for the big matmul weights (biases / LN params stay f32)."""
    scale = float(C) ** -0.5   # module scales scores by n_embd**-0.5
    bf16 = jnp.bfloat16
    cat_heads = lambda w: jnp.concatenate([w[h].T for h in range(w.shape[0])], axis=1)

    acc = {k: [] for k in ('ln1w', 'ln1b', 'wqkv', 'bqkv', 'wproj', 'bproj',
                           'ln2w', 'ln2b', 'w1', 'b1', 'w2', 'b2')}
    for blk in p['blocks']:
        wq_c = cat_heads(blk['wq']) * scale            # fold score scale into Q
        bq_c = blk['bq'].reshape(-1) * scale
        wk_c = cat_heads(blk['wk']); bk_c = blk['bk'].reshape(-1)
        wv_c = cat_heads(blk['wv']); bv_c = blk['bv'].reshape(-1)
        acc['wqkv'].append(jnp.concatenate([wq_c, wk_c, wv_c], axis=1).astype(bf16))  # (C, 3C)
        acc['bqkv'].append(jnp.concatenate([bq_c, bk_c, bv_c])[None, :])              # (1, 3C)
        acc['wproj'].append(blk['wp'].T.astype(bf16)); acc['bproj'].append(blk['bp'][None, :])
        acc['ln1w'].append(blk['ln1_w'][None, :]); acc['ln1b'].append(blk['ln1_b'][None, :])
        acc['ln2w'].append(blk['ln2_w'][None, :]); acc['ln2b'].append(blk['ln2_b'][None, :])
        acc['w1'].append(blk['w1'].T.astype(bf16)); acc['b1'].append(blk['b1'][None, :])
        acc['w2'].append(blk['w2'].T.astype(bf16)); acc['b2'].append(blk['b2'][None, :])

    packed = {k: jnp.stack(v, axis=0) for k, v in acc.items()}
    packed.update(tok=p['tok'], pos=p['pos'],                 # embedding tables stay f32
                  wlm=p['wlm'].T.astype(bf16), blm=p['blm'][None, :])
    return packed


# ----------------------------------------------------------------------------
# pure-JAX f32 reference mirroring the PyTorch module (uses the raw params)
# ----------------------------------------------------------------------------
def reference_forward(idx, p, *, n_heads):
    tok, pos = p['tok'], p['pos']
    B, T = idx.shape
    C = tok.shape[1]
    x = tok[idx] + pos[:T]
    tril = jnp.tril(jnp.ones((T, T), dtype=bool))
    for blk in p['blocks']:
        x = _layer_norm(x, blk['ln1_w'], blk['ln1_b'])
        outs = []
        for h in range(n_heads):
            q = x @ blk['wq'][h].T + blk['bq'][h]
            k = x @ blk['wk'][h].T + blk['bk'][h]
            v = x @ blk['wv'][h].T + blk['bv'][h]
            wei = (q @ jnp.swapaxes(k, -2, -1)) * (C ** -0.5)
            wei = jnp.where(tril, wei, -jnp.inf)
            wei = jax.nn.softmax(wei, axis=-1)
            outs.append(wei @ v)
        x = x + (jnp.concatenate(outs, axis=-1) @ blk['wp'].T + blk['bp'])
        x = _layer_norm(x, blk['ln2_w'], blk['ln2_b'])
        h1 = _gelu_tanh(x @ blk['w1'].T + blk['b1'])
        x = x + (h1 @ blk['w2'].T + blk['b2'])
    return x @ p['wlm'].T + p['blm']


if __name__ == "__main__":
    # config: vocab_size=128, n_embd=32, n_heads=4, cw_size=8, n_blocks=2,
    #         bias=True, use_dropout=False; batch B=2, T=cw_size.
    B, T, C, H, V, L = 2, 8, 32, 4, 128, 2

    key = jax.random.PRNGKey(0)
    kp, ki = jax.random.split(key)
    params = init_params(kp, V=V, C=C, H=H, T=T, L=L)
    packed = pack_params(params, C=C, H=H)
    idx = jax.random.randint(ki, (B, T), 0, V, dtype=jnp.int32)

    out = decoder_lm_forward(idx, packed, B=B, T=T, C=C, H=H, V=V, n_blocks=L)
    out = jax.block_until_ready(out)

    # f32 "highest"-precision oracle, scoped to the reference only (does not
    # leak into the kernel's matmul lowering).
    with jax.default_matmul_precision("highest"):
        ref = reference_forward(idx, params, n_heads=H)
        ref = jax.block_until_ready(ref)

    assert out.shape == (B, T, V)
    # tolerance covers bf16 MXU operands (f32 accumulation) and the
    # approx-reciprocal softmax normalizer; use f32 operands / approx=False
    # for ~2e-3-level agreement.
    assert jnp.allclose(out, ref, atol=5e-2, rtol=5e-2), "mismatch vs reference"

    print("KERNEL_OK")
</pallas_src>

<mosaic_0001>
module attributes {stable_mosaic.version = 11 : i64} {
  func.func @decoder_lm_kernel(%arg0: i32, %arg1: memref<16x1xi32, #tpu.memory_space<vmem>>, %arg2: memref<128x32xf32, #tpu.memory_space<vmem>>, %arg3: memref<8x32xf32, #tpu.memory_space<vmem>>, %arg4: memref<1x1x32xf32, #tpu.memory_space<vmem>>, %arg5: memref<1x1x32xf32, #tpu.memory_space<vmem>>, %arg6: memref<1x32x96xbf16, #tpu.memory_space<vmem>>, %arg7: memref<1x1x96xf32, #tpu.memory_space<vmem>>, %arg8: memref<1x32x32xbf16, #tpu.memory_space<vmem>>, %arg9: memref<1x1x32xf32, #tpu.memory_space<vmem>>, %arg10: memref<1x1x32xf32, #tpu.memory_space<vmem>>, %arg11: memref<1x1x32xf32, #tpu.memory_space<vmem>>, %arg12: memref<1x32x128xbf16, #tpu.memory_space<vmem>>, %arg13: memref<1x1x128xf32, #tpu.memory_space<vmem>>, %arg14: memref<1x128x32xbf16, #tpu.memory_space<vmem>>, %arg15: memref<1x1x32xf32, #tpu.memory_space<vmem>>, %arg16: memref<32x128xbf16, #tpu.memory_space<vmem>>, %arg17: memref<1x128xf32, #tpu.memory_space<vmem>>, %arg18: memref<16x128xf32, #tpu.memory_space<vmem>>, %arg19: memref<16x32xf32, #tpu.memory_space<vmem>>) attributes {dimension_semantics = [#tpu.dimension_semantics<arbitrary>], iteration_bounds = array<i64: 2>, scalar_prefetch = 0 : i64, scratch_operands = 1 : i64, tpu.core_type = #tpu.core_type<tc>, window_params = [{pipeline_mode = #tpu.pipeline_mode<synchronous>, transform_indices = @transform_0, window_bounds = array<i64: 16, 1>}, {pipeline_mode = #tpu.pipeline_mode<synchronous>, transform_indices = @transform_1, window_bounds = array<i64: 128, 32>}, {pipeline_mode = #tpu.pipeline_mode<synchronous>, transform_indices = @transform_2, window_bounds = array<i64: 8, 32>}, {transform_indices = @transform_3, window_bounds = array<i64: 1, 1, 32>}, {transform_indices = @transform_4, window_bounds = array<i64: 1, 1, 32>}, {transform_indices = @transform_5, window_bounds = array<i64: 1, 32, 96>}, {transform_indices = @transform_6, window_bounds = array<i64: 1, 1, 96>}, {transform_indices = @transform_7, window_bounds = array<i64: 1, 32, 32>}, {transform_indices = @transform_8, window_bounds = array<i64: 1, 1, 32>}, {transform_indices = @transform_9, window_bounds = array<i64: 1, 1, 32>}, {transform_indices = @transform_10, window_bounds = array<i64: 1, 1, 32>}, {transform_indices = @transform_11, window_bounds = array<i64: 1, 32, 128>}, {transform_indices = @transform_12, window_bounds = array<i64: 1, 1, 128>}, {transform_indices = @transform_13, window_bounds = array<i64: 1, 128, 32>}, {transform_indices = @transform_14, window_bounds = array<i64: 1, 1, 32>}, {pipeline_mode = #tpu.pipeline_mode<synchronous>, transform_indices = @transform_15, window_bounds = array<i64: 32, 128>}, {pipeline_mode = #tpu.pipeline_mode<synchronous>, transform_indices = @transform_16, window_bounds = array<i64: 1, 128>}, {pipeline_mode = #tpu.pipeline_mode<synchronous>, transform_indices = @transform_17, window_bounds = array<i64: 16, 128>}]} {
    %c0_i32 = arith.constant 0 : i32
    %0 = arith.cmpi eq, %arg0, %c0_i32 : i32
    %1 = arith.extui %0 : i1 to i32
    %c0_i32_0 = arith.constant 0 : i32
    %2 = arith.cmpi ne, %1, %c0_i32_0 : i32
    scf.if %2 {
      %c0_64 = arith.constant 0 : index
      %c0_65 = arith.constant 0 : index
      %154 = vector.load %arg1[%c0_64, %c0_65] : memref<16x1xi32, #tpu.memory_space<vmem>>, vector<16x1xi32>
      %155 = tpu.iota {dimensions = array<i32: 1>} : vector<16x128xi32>
      %156 = vector.broadcast %154 : vector<16x1xi32> to vector<16x128xi32>
      %157 = arith.cmpi eq, %156, %155 : vector<16x128xi32>
      %158 = arith.extui %157 : vector<16x128xi1> to vector<16x128xi32>
      %159 = arith.sitofp %158 : vector<16x128xi32> to vector<16x128xf32>
      %c0_66 = arith.constant 0 : index
      %c0_67 = arith.constant 0 : index
      %160 = vector.load %arg2[%c0_66, %c0_67] : memref<128x32xf32, #tpu.memory_space<vmem>>, vector<128x32xf32>
      %cst_68 = arith.constant dense<0.000000e+00> : vector<16x32xf32>
      %161 = tpu.matmul %159, %160, %cst_68 {dimension_numbers = #tpu.dot_dimension_numbers<[1], [0], [0], [1], [0, 0, 1, 1], [], []>} : vector<16x128xf32>, vector<128x32xf32>, vector<16x32xf32> -> vector<16x32xf32>
      %c0_69 = arith.constant 0 : index
      %c0_70 = arith.constant 0 : index
      %162 = vector.load %arg3[%c0_69, %c0_70] : memref<8x32xf32, #tpu.memory_space<vmem>>, vector<8x32xf32>
      %163 = tpu.concatenate %162, %162 in 0 : vector<8x32xf32>, vector<8x32xf32> -> vector<16x32xf32>
      %164 = arith.addf %161, %163 : vector<16x32xf32>
      %c0_71 = arith.constant 0 : index
      %c0_72 = arith.constant 0 : index
      %165 = vector.load %arg19[%c0_71, %c0_72] : memref<16x32xf32, #tpu.memory_space<vmem>>, vector<16x32xf32>
      tpu.vector_store %arg19[%c0_71, %c0_72], %164 {strides = array<i32>} : memref<16x32xf32, #tpu.memory_space<vmem>>, vector<16x32xf32>,
    } else {
    }
    %c0 = arith.constant 0 : index
    %c0_1 = arith.constant 0 : index
    %3 = vector.load %arg19[%c0, %c0_1] : memref<16x32xf32, #tpu.memory_space<vmem>>, vector<16x32xf32>
    %c0_2 = arith.constant 0 : index
    %c0_3 = arith.constant 0 : index
    %c0_4 = arith.constant 0 : index
    %4 = vector.load %arg4[%c0_2, %c0_3, %c0_4] : memref<1x1x32xf32, #tpu.memory_space<vmem>>, vector<1x1x32xf32>
    %5 = vector.shape_cast %4 : vector<1x1x32xf32> to vector<1x32xf32>
    %c0_5 = arith.constant 0 : index
    %c0_6 = arith.constant 0 : index
    %c0_7 = arith.constant 0 : index
    %6 = vector.load %arg5[%c0_5, %c0_6, %c0_7] : memref<1x1x32xf32, #tpu.memory_space<vmem>>, vector<1x1x32xf32>
    %7 = vector.shape_cast %6 : vector<1x1x32xf32> to vector<1x32xf32>
    %cst = arith.constant dense<0.000000e+00> : vector<16xf32>
    %8 = vector.multi_reduction <add>, %3, %cst [1] : vector<16x32xf32> to vector<16xf32>
    %9 = vector.shape_cast %8 : vector<16xf32> to vector<16x1xf32>
    %cst_8 = arith.constant 3.200000e+01 : f32
    %10 = vector.broadcast %cst_8 : f32 to vector<16x1xf32>
    %11 = arith.divf %9, %10 : vector<16x1xf32>
    %12 = vector.broadcast %11 : vector<16x1xf32> to vector<16x32xf32>
    %13 = arith.subf %3, %12 : vector<16x32xf32>
    %14 = arith.mulf %13, %13 : vector<16x32xf32>
    %cst_9 = arith.constant dense<0.000000e+00> : vector<16xf32>
    %15 = vector.multi_reduction <add>, %14, %cst_9 [1] : vector<16x32xf32> to vector<16xf32>
    %16 = vector.shape_cast %15 : vector<16xf32> to vector<16x1xf32>
    %cst_10 = arith.constant 3.200000e+01 : f32
    %17 = vector.broadcast %cst_10 : f32 to vector<16x1xf32>
    %18 = arith.divf %16, %17 : vector<16x1xf32>
    %19 = vector.broadcast %11 : vector<16x1xf32> to vector<16x32xf32>
    %20 = arith.subf %3, %19 : vector<16x32xf32>
    %cst_11 = arith.constant 9.99999974E-6 : f32
    %21 = vector.broadcast %cst_11 : f32 to vector<16x1xf32>
    %22 = arith.addf %18, %21 : vector<16x1xf32>
    %23 = math.rsqrt %22 : vector<16x1xf32>
    %24 = vector.broadcast %23 : vector<16x1xf32> to vector<16x32xf32>
    %25 = arith.mulf %20, %24 : vector<16x32xf32>
    %26 = vector.broadcast %5 : vector<1x32xf32> to vector<16x32xf32>
    %27 = arith.mulf %25, %26 : vector<16x32xf32>
    %28 = vector.broadcast %7 : vector<1x32xf32> to vector<16x32xf32>
    %29 = arith.addf %27, %28 : vector<16x32xf32>
    %30 = arith.truncf %29 : vector<16x32xf32> to vector<16x32xbf16>
    %c0_12 = arith.constant 0 : index
    %c0_13 = arith.constant 0 : index
    %c0_14 = arith.constant 0 : index
    %31 = vector.load %arg6[%c0_12, %c0_13, %c0_14] : memref<1x32x96xbf16, #tpu.memory_space<vmem>>, vector<1x32x96xbf16>
    %32 = vector.shape_cast %31 : vector<1x32x96xbf16> to vector<32x96xbf16>
    %cst_15 = arith.constant dense<0.000000e+00> : vector<16x96xf32>
    %33 = tpu.matmul %30, %32, %cst_15 {dimension_numbers = #tpu.dot_dimension_numbers<[1], [0], [0], [1], [0, 0, 1, 1], [], []>} : vector<16x32xbf16>, vector<32x96xbf16>, vector<16x96xf32> -> vector<16x96xf32>
    %c0_16 = arith.constant 0 : index
    %c0_17 = arith.constant 0 : index
    %c0_18 = arith.constant 0 : index
    %34 = vector.load %arg7[%c0_16, %c0_17, %c0_18] : memref<1x1x96xf32, #tpu.memory_space<vmem>>, vector<1x1x96xf32>
    %35 = vector.shape_cast %34 : vector<1x1x96xf32> to vector<1x96xf32>
    %36 = vector.broadcast %35 : vector<1x96xf32> to vector<16x96xf32>
    %37 = arith.addf %33, %36 : vector<16x96xf32>
    %38 = vector.shape_cast %37 : vector<16x96xf32> to vector<2x8x96xf32>
    %39 = vector.extract_strided_slice %38 {offsets = [0, 0, 0], sizes = [2, 8, 8], strides = [1, 1, 1]} : vector<2x8x96xf32> to vector<2x8x8xf32>
    %40 = vector.extract_strided_slice %38 {offsets = [0, 0, 8], sizes = [2, 8, 8], strides = [1, 1, 1]} : vector<2x8x96xf32> to vector<2x8x8xf32>
    %41 = vector.extract_strided_slice %38 {offsets = [0, 0, 16], sizes = [2, 8, 8], strides = [1, 1, 1]} : vector<2x8x96xf32> to vector<2x8x8xf32>
    %42 = vector.extract_strided_slice %38 {offsets = [0, 0, 24], sizes = [2, 8, 8], strides = [1, 1, 1]} : vector<2x8x96xf32> to vector<2x8x8xf32>
    %43 = tpu.concatenate %39, %40, %41, %42 in 0 : vector<2x8x8xf32>, vector<2x8x8xf32>, vector<2x8x8xf32>, vector<2x8x8xf32> -> vector<8x8x8xf32>
    %44 = vector.extract_strided_slice %38 {offsets = [0, 0, 32], sizes = [2, 8, 8], strides = [1, 1, 1]} : vector<2x8x96xf32> to vector<2x8x8xf32>
    %45 = vector.extract_strided_slice %38 {offsets = [0, 0, 40], sizes = [2, 8, 8], strides = [1, 1, 1]} : vector<2x8x96xf32> to vector<2x8x8xf32>
    %46 = vector.extract_strided_slice %38 {offsets = [0, 0, 48], sizes = [2, 8, 8], strides = [1, 1, 1]} : vector<2x8x96xf32> to vector<2x8x8xf32>
    %47 = vector.extract_strided_slice %38 {offsets = [0, 0, 56], sizes = [2, 8, 8], strides = [1, 1, 1]} : vector<2x8x96xf32> to vector<2x8x8xf32>
    %48 = tpu.concatenate %44, %45, %46, %47 in 0 : vector<2x8x8xf32>, vector<2x8x8xf32>, vector<2x8x8xf32>, vector<2x8x8xf32> -> vector<8x8x8xf32>
    %49 = vector.extract_strided_slice %38 {offsets = [0, 0, 64], sizes = [2, 8, 8], strides = [1, 1, 1]} : vector<2x8x96xf32> to vector<2x8x8xf32>
    %50 = vector.extract_strided_slice %38 {offsets = [0, 0, 72], sizes = [2, 8, 8], strides = [1, 1, 1]} : vector<2x8x96xf32> to vector<2x8x8xf32>
    %51 = vector.extract_strided_slice %38 {offsets = [0, 0, 80], sizes = [2, 8, 8], strides = [1, 1, 1]} : vector<2x8x96xf32> to vector<2x8x8xf32>
    %52 = vector.extract_strided_slice %38 {offsets = [0, 0, 88], sizes = [2, 8, 8], strides = [1, 1, 1]} : vector<2x8x96xf32> to vector<2x8x8xf32>
    %53 = tpu.concatenate %49, %50, %51, %52 in 0 : vector<2x8x8xf32>, vector<2x8x8xf32>, vector<2x8x8xf32>, vector<2x8x8xf32> -> vector<8x8x8xf32>
    %54 = tpu.iota {dimensions = array<i32: 0>} : vector<8x8xi32>
    %55 = tpu.iota {dimensions = array<i32: 1>} : vector<8x8xi32>
    %56 = arith.cmpi sle, %55, %54 : vector<8x8xi32>
    %cst_19 = arith.constant 0.000000e+00 : f32
    %cst_20 = arith.constant -1.000000e+30 : f32
    %57 = vector.broadcast %cst_19 : f32 to vector<8x8xf32>
    %58 = vector.broadcast %cst_20 : f32 to vector<8x8xf32>
    %59 = arith.select %56, %57, %58 : vector<8x8xi1>, vector<8x8xf32>
    %60 = arith.truncf %43 : vector<8x8x8xf32> to vector<8x8x8xbf16>
    %61 = arith.truncf %48 : vector<8x8x8xf32> to vector<8x8x8xbf16>
    "tpu.trace_start"() <{level = 10 : i32, message = "bqd,bkd->bqk"}> : () -> ()
    %cst_21 = arith.constant dense<0.000000e+00> : vector<8x8x8xf32>
    %62 = tpu.matmul %60, %61, %cst_21 {dimension_numbers = #tpu.dot_dimension_numbers<[2], [2], [1], [1], [0, 0, 0, 1, 1, 1], [0], [0]>} : vector<8x8x8xbf16>, vector<8x8x8xbf16>, vector<8x8x8xf32> -> vector<8x8x8xf32>
    "tpu.trace_stop"() : () -> ()
    %63 = vector.shape_cast %59 : vector<8x8xf32> to vector<1x8x8xf32>
    %64 = vector.broadcast %63 : vector<1x8x8xf32> to vector<8x8x8xf32>
    %65 = arith.addf %62, %64 : vector<8x8x8xf32>
    %cst_22 = arith.constant dense<0xFF800000> : vector<8x8xf32>
    %66 = vector.multi_reduction <maximumf>, %65, %cst_22 [2] : vector<8x8x8xf32> to vector<8x8xf32>
    %67 = vector.shape_cast %66 : vector<8x8xf32> to vector<8x8x1xf32>
    %68 = vector.broadcast %67 : vector<8x8x1xf32> to vector<8x8x8xf32>
    %69 = arith.subf %65, %68 : vector<8x8x8xf32>
    %70 = math.exp %69 : vector<8x8x8xf32>
    %cst_23 = arith.constant dense<0.000000e+00> : vector<8x8xf32>
    %71 = vector.multi_reduction <add>, %70, %cst_23 [2] : vector<8x8x8xf32> to vector<8x8xf32>
    %72 = vector.shape_cast %71 : vector<8x8xf32> to vector<8x8x1xf32>
    %73 = tpu.reciprocal %72 {approx = true} : vector<8x8x1xf32> -> vector<8x8x1xf32>
    %74 = vector.broadcast %73 : vector<8x8x1xf32> to vector<8x8x8xf32>
    %75 = arith.mulf %70, %74 : vector<8x8x8xf32>
    %76 = arith.truncf %75 : vector<8x8x8xf32> to vector<8x8x8xbf16>
    %77 = arith.truncf %53 : vector<8x8x8xf32> to vector<8x8x8xbf16>
    "tpu.trace_start"() <{level = 10 : i32, message = "bqk,bkd->bqd"}> : () -> ()
    %cst_24 = arith.constant dense<0.000000e+00> : vector<8x8x8xf32>
    %78 = tpu.matmul %76, %77, %cst_24 {dimension_numbers = #tpu.dot_dimension_numbers<[2], [1], [1], [2], [0, 0, 0, 1, 1, 2], [0], [0]>} : vector<8x8x8xbf16>, vector<8x8x8xbf16>, vector<8x8x8xf32> -> vector<8x8x8xf32>
    "tpu.trace_stop"() : () -> ()
    %79 = vector.extract_strided_slice %78 {offsets = [0, 0, 0], sizes = [2, 8, 8], strides = [1, 1, 1]} : vector<8x8x8xf32> to vector<2x8x8xf32>
    %80 = vector.extract_strided_slice %78 {offsets = [2, 0, 0], sizes = [2, 8, 8], strides = [1, 1, 1]} : vector<8x8x8xf32> to vector<2x8x8xf32>
    %81 = vector.extract_strided_slice %78 {offsets = [4, 0, 0], sizes = [2, 8, 8], strides = [1, 1, 1]} : vector<8x8x8xf32> to vector<2x8x8xf32>
    %82 = vector.extract_strided_slice %78 {offsets = [6, 0, 0], sizes = [2, 8, 8], strides = [1, 1, 1]} : vector<8x8x8xf32> to vector<2x8x8xf32>
    %83 = tpu.concatenate %79, %80, %81, %82 in 2 : vector<2x8x8xf32>, vector<2x8x8xf32>, vector<2x8x8xf32>, vector<2x8x8xf32> -> vector<2x8x32xf32>
    %84 = vector.shape_cast %83 : vector<2x8x32xf32> to vector<16x32xf32>
    %85 = arith.truncf %84 : vector<16x32xf32> to vector<16x32xbf16>
    %c0_25 = arith.constant 0 : index
    %c0_26 = arith.constant 0 : index
    %c0_27 = arith.constant 0 : index
    %86 = vector.load %arg8[%c0_25, %c0_26, %c0_27] : memref<1x32x32xbf16, #tpu.memory_space<vmem>>, vector<1x32x32xbf16>
    %87 = vector.shape_cast %86 : vector<1x32x32xbf16> to vector<32x32xbf16>
    %cst_28 = arith.constant dense<0.000000e+00> : vector<16x32xf32>
    %88 = tpu.matmul %85, %87, %cst_28 {dimension_numbers = #tpu.dot_dimension_numbers<[1], [0], [0], [1], [0, 0, 1, 1], [], []>} : vector<16x32xbf16>, vector<32x32xbf16>, vector<16x32xf32> -> vector<16x32xf32>
    %c0_29 = arith.constant 0 : index
    %c0_30 = arith.constant 0 : index
    %c0_31 = arith.constant 0 : index
    %89 = vector.load %arg9[%c0_29, %c0_30, %c0_31] : memref<1x1x32xf32, #tpu.memory_space<vmem>>, vector<1x1x32xf32>
    %90 = vector.shape_cast %89 : vector<1x1x32xf32> to vector<1x32xf32>
    %91 = vector.broadcast %90 : vector<1x32xf32> to vector<16x32xf32>
    %92 = arith.addf %88, %91 : vector<16x32xf32>
    %93 = arith.addf %29, %92 : vector<16x32xf32>
    %c0_32 = arith.constant 0 : index
    %c0_33 = arith.constant 0 : index
    %c0_34 = arith.constant 0 : index
    %94 = vector.load %arg10[%c0_32, %c0_33, %c0_34] : memref<1x1x32xf32, #tpu.memory_space<vmem>>, vector<1x1x32xf32>
    %95 = vector.shape_cast %94 : vector<1x1x32xf32> to vector<1x32xf32>
    %c0_35 = arith.constant 0 : index
    %c0_36 = arith.constant 0 : index
    %c0_37 = arith.constant 0 : index
    %96 = vector.load %arg11[%c0_35, %c0_36, %c0_37] : memref<1x1x32xf32, #tpu.memory_space<vmem>>, vector<1x1x32xf32>
    %97 = vector.shape_cast %96 : vector<1x1x32xf32> to vector<1x32xf32>
    %cst_38 = arith.constant dense<0.000000e+00> : vector<16xf32>
    %98 = vector.multi_reduction <add>, %93, %cst_38 [1] : vector<16x32xf32> to vector<16xf32>
    %99 = vector.shape_cast %98 : vector<16xf32> to vector<16x1xf32>
    %cst_39 = arith.constant 3.200000e+01 : f32
    %100 = vector.broadcast %cst_39 : f32 to vector<16x1xf32>
    %101 = arith.divf %99, %100 : vector<16x1xf32>
    %102 = vector.broadcast %101 : vector<16x1xf32> to vector<16x32xf32>
    %103 = arith.subf %93, %102 : vector<16x32xf32>
    %104 = arith.mulf %103, %103 : vector<16x32xf32>
    %cst_40 = arith.constant dense<0.000000e+00> : vector<16xf32>
    %105 = vector.multi_reduction <add>, %104, %cst_40 [1] : vector<16x32xf32> to vector<16xf32>
    %106 = vector.shape_cast %105 : vector<16xf32> to vector<16x1xf32>
    %cst_41 = arith.constant 3.200000e+01 : f32
    %107 = vector.broadcast %cst_41 : f32 to vector<16x1xf32>
    %108 = arith.divf %106, %107 : vector<16x1xf32>
    %109 = vector.broadcast %101 : vector<16x1xf32> to vector<16x32xf32>
    %110 = arith.subf %93, %109 : vector<16x32xf32>
    %cst_42 = arith.constant 9.99999974E-6 : f32
    %111 = vector.broadcast %cst_42 : f32 to vector<16x1xf32>
    %112 = arith.addf %108, %111 : vector<16x1xf32>
    %113 = math.rsqrt %112 : vector<16x1xf32>
    %114 = vector.broadcast %113 : vector<16x1xf32> to vector<16x32xf32>
    %115 = arith.mulf %110, %114 : vector<16x32xf32>
    %116 = vector.broadcast %95 : vector<1x32xf32> to vector<16x32xf32>
    %117 = arith.mulf %115, %116 : vector<16x32xf32>
    %118 = vector.broadcast %97 : vector<1x32xf32> to vector<16x32xf32>
    %119 = arith.addf %117, %118 : vector<16x32xf32>
    %120 = arith.truncf %119 : vector<16x32xf32> to vector<16x32xbf16>
    %c0_43 = arith.constant 0 : index
    %c0_44 = arith.constant 0 : index
    %c0_45 = arith.constant 0 : index
    %121 = vector.load %arg12[%c0_43, %c0_44, %c0_45] : memref<1x32x128xbf16, #tpu.memory_space<vmem>>, vector<1x32x128xbf16>
    %122 = vector.shape_cast %121 : vector<1x32x128xbf16> to vector<32x128xbf16>
    %cst_46 = arith.constant dense<0.000000e+00> : vector<16x128xf32>
    %123 = tpu.matmul %120, %122, %cst_46 {dimension_numbers = #tpu.dot_dimension_numbers<[1], [0], [0], [1], [0, 0, 1, 1], [], []>} : vector<16x32xbf16>, vector<32x128xbf16>, vector<16x128xf32> -> vector<16x128xf32>
    %c0_47 = arith.constant 0 : index
    %c0_48 = arith.constant 0 : index
    %c0_49 = arith.constant 0 : index
    %124 = vector.load %arg13[%c0_47, %c0_48, %c0_49] : memref<1x1x128xf32, #tpu.memory_space<vmem>>, vector<1x1x128xf32>
    %125 = vector.shape_cast %124 : vector<1x1x128xf32> to vector<1x128xf32>
    %126 = vector.broadcast %125 : vector<1x128xf32> to vector<16x128xf32>
    %127 = arith.addf %123, %126 : vector<16x128xf32>
    %cst_50 = arith.constant 5.000000e-01 : f32
    %128 = vector.broadcast %cst_50 : f32 to vector<16x128xf32>
    %129 = arith.mulf %128, %127 : vector<16x128xf32>
    %cst_51 = arith.constant 4.471500e-02 : f32
    %130 = vector.broadcast %cst_51 : f32 to vector<16x128xf32>
    %131 = arith.mulf %130, %127 : vector<16x128xf32>
    %132 = arith.mulf %131, %127 : vector<16x128xf32>
    %133 = arith.mulf %132, %127 : vector<16x128xf32>
    %134 = arith.addf %127, %133 : vector<16x128xf32>
    %cst_52 = arith.constant 0.797884583 : f32
    %135 = vector.broadcast %cst_52 : f32 to vector<16x128xf32>
    %136 = arith.mulf %135, %134 : vector<16x128xf32>
    %137 = math.tanh %136 : vector<16x128xf32>
    %cst_53 = arith.constant 1.000000e+00 : f32
    %138 = vector.broadcast %cst_53 : f32 to vector<16x128xf32>
    %139 = arith.addf %138, %137 : vector<16x128xf32>
    %140 = arith.mulf %129, %139 : vector<16x128xf32>
    %141 = arith.truncf %140 : vector<16x128xf32> to vector<16x128xbf16>
    %c0_54 = arith.constant 0 : index
    %c0_55 = arith.constant 0 : index
    %c0_56 = arith.constant 0 : index
    %142 = vector.load %arg14[%c0_54, %c0_55, %c0_56] : memref<1x128x32xbf16, #tpu.memory_space<vmem>>, vector<1x128x32xbf16>
    %143 = vector.shape_cast %142 : vector<1x128x32xbf16> to vector<128x32xbf16>
    %cst_57 = arith.constant dense<0.000000e+00> : vector<16x32xf32>
    %144 = tpu.matmul %141, %143, %cst_57 {dimension_numbers = #tpu.dot_dimension_numbers<[1], [0], [0], [1], [0, 0, 1, 1], [], []>} : vector<16x128xbf16>, vector<128x32xbf16>, vector<16x32xf32> -> vector<16x32xf32>
    %145 = arith.addf %119, %144 : vector<16x32xf32>
    %c0_58 = arith.constant 0 : index
    %c0_59 = arith.constant 0 : index
    %c0_60 = arith.constant 0 : index
    %146 = vector.load %arg15[%c0_58, %c0_59, %c0_60] : memref<1x1x32xf32, #tpu.memory_space<vmem>>, vector<1x1x32xf32>
    %147 = vector.shape_cast %146 : vector<1x1x32xf32> to vector<1x32xf32>
    %148 = vector.broadcast %147 : vector<1x32xf32> to vector<16x32xf32>
    %149 = arith.addf %145, %148 : vector<16x32xf32>
    %c0_61 = arith.constant 0 : index
    %c0_62 = arith.constant 0 : index
    %150 = vector.load %arg19[%c0_61, %c0_62] : memref<16x32xf32, #tpu.memory_space<vmem>>, vector<16x32xf32>
    tpu.vector_store %arg19[%c0_61, %c0_62], %149 {strides = array<i32>} : memref<16x32xf32, #tpu.memory_space<vmem>>, vector<16x32xf32>,
    %c1_i32 = arith.constant 1 : i32
    %151 = arith.cmpi eq, %arg0, %c1_i32 : i32
    %152 = arith.extui %151 : i1 to i32
    %c0_i32_63 = arith.constant 0 : i32
    %153 = arith.cmpi ne, %152, %c0_i32_63 : i32
    scf.if %153 {
      %154 = arith.truncf %149 : vector<16x32xf32> to vector<16x32xbf16>
      %c0_64 = arith.constant 0 : index
      %c0_65 = arith.constant 0 : index
      %155 = vector.load %arg16[%c0_64, %c0_65] : memref<32x128xbf16, #tpu.memory_space<vmem>>, vector<32x128xbf16>
      %cst_66 = arith.constant dense<0.000000e+00> : vector<16x128xf32>
      %156 = tpu.matmul %154, %155, %cst_66 {dimension_numbers = #tpu.dot_dimension_numbers<[1], [0], [0], [1], [0, 0, 1, 1], [], []>} : vector<16x32xbf16>, vector<32x128xbf16>, vector<16x128xf32> -> vector<16x128xf32>
      %c0_67 = arith.constant 0 : index
      %c0_68 = arith.constant 0 : index
      %157 = vector.load %arg17[%c0_67, %c0_68] : memref<1x128xf32, #tpu.memory_space<vmem>>, vector<1x128xf32>
      %158 = vector.broadcast %157 : vector<1x128xf32> to vector<16x128xf32>
      %159 = arith.addf %156, %158 : vector<16x128xf32>
      %c0_69 = arith.constant 0 : index
      %c0_70 = arith.constant 0 : index
      %160 = vector.load %arg18[%c0_69, %c0_70] : memref<16x128xf32, #tpu.memory_space<vmem>>, vector<16x128xf32>
      tpu.vector_store %arg18[%c0_69, %c0_70], %159 {strides = array<i32>} : memref<16x128xf32, #tpu.memory_space<vmem>>, vector<16x128xf32>,
    } else {
    }
    return
  }
  func.func @transform_0(%arg0: i32) -> (i32, i32) {
    %c0_i32 = arith.constant 0 : i32
    %c0_i32_0 = arith.constant 0 : i32
    %c0_i32_1 = arith.constant 0 : i32
    return %c0_i32, %c0_i32_0 : i32, i32
  }
  func.func @transform_1(%arg0: i32) -> (i32, i32) {
    %c0_i32 = arith.constant 0 : i32
    %c0_i32_0 = arith.constant 0 : i32
    %c0_i32_1 = arith.constant 0 : i32
    return %c0_i32, %c0_i32_0 : i32, i32
  }
  func.func @transform_2(%arg0: i32) -> (i32, i32) {
    %c0_i32 = arith.constant 0 : i32
    %c0_i32_0 = arith.constant 0 : i32
    %c0_i32_1 = arith.constant 0 : i32
    return %c0_i32, %c0_i32_0 : i32, i32
  }
  func.func @transform_3(%arg0: i32) -> (i32, i32, i32) {
    %c0_i32 = arith.constant 0 : i32
    %c0_i32_0 = arith.constant 0 : i32
    %c0_i32_1 = arith.constant 0 : i32
    return %arg0, %c0_i32, %c0_i32_0 : i32, i32, i32
  }
  func.func @transform_4(%arg0: i32) -> (i32, i32, i32) {
    %c0_i32 = arith.constant 0 : i32
    %c0_i32_0 = arith.constant 0 : i32
    %c0_i32_1 = arith.constant 0 : i32
    return %arg0, %c0_i32, %c0_i32_0 : i32, i32, i32
  }
  func.func @transform_5(%arg0: i32) -> (i32, i32, i32) {
    %c0_i32 = arith.constant 0 : i32
    %c0_i32_0 = arith.constant 0 : i32
    %c0_i32_1 = arith.constant 0 : i32
    return %arg0, %c0_i32, %c0_i32_0 : i32, i32, i32
  }
  func.func @transform_6(%arg0: i32) -> (i32, i32, i32) {
    %c0_i32 = arith.constant 0 : i32
    %c0_i32_0 = arith.constant 0 : i32
    %c0_i32_1 = arith.constant 0 : i32
    return %arg0, %c0_i32, %c0_i32_0 : i32, i32, i32
  }
  func.func @transform_7(%arg0: i32) -> (i32, i32, i32) {
    %c0_i32 = arith.constant 0 : i32
    %c0_i32_0 = arith.constant 0 : i32
    %c0_i32_1 = arith.constant 0 : i32
    return %arg0, %c0_i32, %c0_i32_0 : i32, i32, i32
  }
  func.func @transform_8(%arg0: i32) -> (i32, i32, i32) {
    %c0_i32 = arith.constant 0 : i32
    %c0_i32_0 = arith.constant 0 : i32
    %c0_i32_1 = arith.constant 0 : i32
    return %arg0, %c0_i32, %c0_i32_0 : i32, i32, i32
  }
  func.func @transform_9(%arg0: i32) -> (i32, i32, i32) {
    %c0_i32 = arith.constant 0 : i32
    %c0_i32_0 = arith.constant 0 : i32
    %c0_i32_1 = arith.constant 0 : i32
    return %arg0, %c0_i32, %c0_i32_0 : i32, i32, i32
  }
  func.func @transform_10(%arg0: i32) -> (i32, i32, i32) {
    %c0_i32 = arith.constant 0 : i32
    %c0_i32_0 = arith.constant 0 : i32
    %c0_i32_1 = arith.constant 0 : i32
    return %arg0, %c0_i32, %c0_i32_0 : i32, i32, i32
  }
  func.func @transform_11(%arg0: i32) -> (i32, i32, i32) {
    %c0_i32 = arith.constant 0 : i32
    %c0_i32_0 = arith.constant 0 : i32
    %c0_i32_1 = arith.constant 0 : i32
    return %arg0, %c0_i32, %c0_i32_0 : i32, i32, i32
  }
  func.func @transform_12(%arg0: i32) -> (i32, i32, i32) {
    %c0_i32 = arith.constant 0 : i32
    %c0_i32_0 = arith.constant 0 : i32
    %c0_i32_1 = arith.constant 0 : i32
    return %arg0, %c0_i32, %c0_i32_0 : i32, i32, i32
  }
  func.func @transform_13(%arg0: i32) -> (i32, i32, i32) {
    %c0_i32 = arith.constant 0 : i32
    %c0_i32_0 = arith.constant 0 : i32
    %c0_i32_1 = arith.constant 0 : i32
    return %arg0, %c0_i32, %c0_i32_0 : i32, i32, i32
  }
  func.func @transform_14(%arg0: i32) -> (i32, i32, i32) {
    %c0_i32 = arith.constant 0 : i32
    %c0_i32_0 = arith.constant 0 : i32
    %c0_i32_1 = arith.constant 0 : i32
    return %arg0, %c0_i32, %c0_i32_0 : i32, i32, i32
  }
  func.func @transform_15(%arg0: i32) -> (i32, i32) {
    %c0_i32 = arith.constant 0 : i32
    %c0_i32_0 = arith.constant 0 : i32
    %c0_i32_1 = arith.constant 0 : i32
    return %c0_i32, %c0_i32_0 : i32, i32
  }
  func.func @transform_16(%arg0: i32) -> (i32, i32) {
    %c0_i32 = arith.constant 0 : i32
    %c0_i32_0 = arith.constant 0 : i32
    %c0_i32_1 = arith.constant 0 : i32
    return %c0_i32, %c0_i32_0 : i32, i32
  }
  func.func @transform_17(%arg0: i32) -> (i32, i32) {
    %c0_i32 = arith.constant 0 : i32
    %c0_i32_0 = arith.constant 0 : i32
    %c0_i32_1 = arith.constant 0 : i32
    return %c0_i32, %c0_i32_0 : i32, i32
  }
}

</mosaic_0001>

<llo_original>
// kernel: tpu_custom_call.1
$region0: #{tpu_custom_call.1}
  #allocation0 [shape = 'u32[]', space=smem, size = 0x4, offset = 0x4, fixed_abs, tag = 'smem constant byte address 0x4 - core index']
  #allocation1 [shape = 'u32[72,128]{1,0:T(1,128)}', space=vmem, size = 0x9000, scoped, tag = 'internal scratch']
  #allocation2 [shape = 'f32[16,32]{1,0:T(8,128)}', space=vmem, size = 0x2000, scoped, tag = 'scratch operand']
  %s0 = inlined_call_operand.vmem [shape: s32[16,1], index: 0, kind: input, shape index: {}]
  %s1 = inlined_call_operand.vmem [shape: f32[128,32], index: 1, kind: input, shape index: {}]
  %s2 = inlined_call_operand.vmem [shape: f32[8,32], index: 2, kind: input, shape index: {}]
  %s3 = inlined_call_operand.vmem [shape: f32[2,1,32], index: 3, kind: input, shape index: {}]
  %s4 = inlined_call_operand.vmem [shape: f32[2,1,32], index: 4, kind: input, shape index: {}]
  %s5 = inlined_call_operand.vmem [shape: bf16[2,32,96], index: 5, kind: input, shape index: {}]
  %s6 = inlined_call_operand.vmem [shape: f32[2,1,96], index: 6, kind: input, shape index: {}]
  %s7 = inlined_call_operand.vmem [shape: bf16[2,32,32], index: 7, kind: input, shape index: {}]
  %s8 = inlined_call_operand.vmem [shape: f32[2,1,32], index: 8, kind: input, shape index: {}]
  %s9 = inlined_call_operand.vmem [shape: f32[2,1,32], index: 9, kind: input, shape index: {}]
  %s10 = inlined_call_operand.vmem [shape: f32[2,1,32], index: 10, kind: input, shape index: {}]
  %s11 = inlined_call_operand.vmem [shape: bf16[2,32,128], index: 11, kind: input, shape index: {}]
  %s12 = inlined_call_operand.vmem [shape: f32[2,1,128], index: 12, kind: input, shape index: {}]
  %s13 = inlined_call_operand.vmem [shape: bf16[2,128,32], index: 13, kind: input, shape index: {}]
  %s14 = inlined_call_operand.vmem [shape: f32[2,1,32], index: 14, kind: input, shape index: {}]
  %s15 = inlined_call_operand.vmem [shape: bf16[32,128], index: 15, kind: input, shape index: {}]
  %s16 = inlined_call_operand.vmem [shape: f32[1,128], index: 16, kind: input, shape index: {}]
  %s17 = inlined_call_operand.hbm [shape: f32[16,128], index: 17, kind: output, shape index: {}]
  %s18 = sld [smem:[#allocation0]]
  $region109: #{tpu_custom_call.1} parent=0
    _
  %s20 = ssub.s32 1, %s18
  %s21 = scalar_select 0, %s20, %s18
  $region1: #{tpu_custom_call.1} parent=0
    #allocation3 [shape = 'u8[8192]{0}', space=vmem, size = 0x2000, scoped, tag = 'output window, operand 0, single buffered']
    #allocation4 [shape = 's32[2]{0}', space=sflag, size = 0x8, scoped, tag = 'scoped memory for tpu_custom_call.1']
    %22 = vsyncpa [#allocation4], 0
    loop: start=0, step=1, limit=4
    $region2: #{tpu_custom_call.1} parent=1 // loop_pre_header
      _
    $region3: #{tpu_custom_call.1} parent=1 // loop_header
      %s24 = sphi 0, %s28
      %p25 = scmp.ge.s32.totalorder %s24, 4
      %s32 = sphi 0, %s32
      %s34 = sphi 0, %s32
      %s35 = sphi 0, %s34
      %s49 = sphi 0, %s35
      %s53 = sphi 0, %s53
      %s55 = sphi 0, %s53
      %s56 = sphi 0, %s55
      %s70 = sphi 0, %s56
      %s74 = sphi 0, %s74
      %s76 = sphi 0, %s74
      %s77 = sphi 0, %s76
      %s91 = sphi 0, %s77
      %s97 = sphi 0, %s99
      %s100 = sphi 0, %s97
      %s101 = sphi 0, %s100
      %s117 = sphi 0, %s101
      %s123 = sphi 0, %s125
      %s126 = sphi 0, %s123
      %s127 = sphi 0, %s126
      %s143 = sphi 0, %s127
      %s149 = sphi 0, %s151
      %s152 = sphi 0, %s149
      %s153 = sphi 0, %s152
      %s169 = sphi 0, %s153
      %s175 = sphi 0, %s177
      %s178 = sphi 0, %s175
      %s179 = sphi 0, %s178
      %s195 = sphi 0, %s179
      %s201 = sphi 0, %s203
      %s204 = sphi 0, %s201
      %s205 = sphi 0, %s204
      %s221 = sphi 0, %s205
      %s227 = sphi 0, %s229
      %s230 = sphi 0, %s227
      %s231 = sphi 0, %s230
      %s247 = sphi 0, %s231
      %s253 = sphi 0, %s255
      %s256 = sphi 0, %s253
      %s257 = sphi 0, %s256
      %s273 = sphi 0, %s257
      %s279 = sphi 0, %s281
      %s282 = sphi 0, %s279
      %s283 = sphi 0, %s282
      %s299 = sphi 0, %s283
      %s305 = sphi 0, %s307
      %s308 = sphi 0, %s305
      %s309 = sphi 0, %s308
      %s325 = sphi 0, %s309
      %s331 = sphi 0, %s333
      %s334 = sphi 0, %s331
      %s335 = sphi 0, %s334
      %s351 = sphi 0, %s335
      %s357 = sphi 0, %s359
      %s360 = sphi 0, %s357
      %s361 = sphi 0, %s360
      %s377 = sphi 0, %s361
      %s383 = sphi 0, %s385
      %s386 = sphi 0, %s383
      %s387 = sphi 0, %s386
      %s403 = sphi 0, %s387
      %s407 = sphi 0, %s407
      %s409 = sphi 0, %s407
      %s410 = sphi 0, %s409
      %s424 = sphi 0, %s410
      %s428 = sphi 0, %s428
      %s430 = sphi 0, %s428
      %s431 = sphi 0, %s430
      %s445 = sphi 0, %s431
      %s449 = sphi 0, %s449
      %s451 = sphi 0, %s449
      %s452 = sphi 0, %s451
      %s466 = sphi 0, %s452
    $region4: #{tpu_custom_call.1} parent=1 // loop_header_branch
      %27 = sbr.rel (%p25) target = $region8
    $region5: #{tpu_custom_call.1} parent=1 // loop_body
      %s29 = ssub.s32 %s24, 1
      %s30 = ssub.s32 %s24, 2
      %s31 = sadd.s32 %s24, 1
      %s33 = sadd.s32 %s32, 1
      %p36 = scmp.eq.s32.totalorder %s24, 1
      %p37 = scmp.ne.s32.totalorder %s32, %s34
      %p38 = scmp.eq.s32.totalorder %s24, 0
      %p39 = por %p37, %p38
      %p40 = scmp.ne.s32.totalorder %s32, %s34
      %p41 = scmp.eq.s32.totalorder %s29, 1
      %p42 = por %p40, %p41
      %p43 = scmp.ne.s32.totalorder %s34, %s35
      %p44 = scmp.eq.s32.totalorder %s29, 0
      %p45 = por %p43, %p44
      %p46 = scmp.ne.s32.totalorder %s34, %s35
      %p47 = scmp.eq.s32.totalorder %s30, 1
      %p48 = por %p46, %p47
      %p50 = scmp.ne.s32.totalorder %s35, %s49
      %p51 = scmp.eq.s32.totalorder %s30, 0
      %p52 = por %p50, %p51
      %s54 = sadd.s32 %s53, 1
      %p57 = scmp.eq.s32.totalorder %s24, 1
      %p58 = scmp.ne.s32.totalorder %s53, %s55
      %p59 = scmp.eq.s32.totalorder %s24, 0
      %p60 = por %p58, %p59
      %p61 = scmp.ne.s32.totalorder %s53, %s55
      %p62 = scmp.eq.s32.totalorder %s29, 1
      %p63 = por %p61, %p62
      %p64 = scmp.ne.s32.totalorder %s55, %s56
      %p65 = scmp.eq.s32.totalorder %s29, 0
      %p66 = por %p64, %p65
      %p67 = scmp.ne.s32.totalorder %s55, %s56
      %p68 = scmp.eq.s32.totalorder %s30, 1
      %p69 = por %p67, %p68
      %p71 = scmp.ne.s32.totalorder %s56, %s70
      %p72 = scmp.eq.s32.totalorder %s30, 0
      %p73 = por %p71, %p72
      %s75 = sadd.s32 %s74, 1
      %p78 = scmp.eq.s32.totalorder %s24, 1
      %p79 = scmp.ne.s32.totalorder %s74, %s76
      %p80 = scmp.eq.s32.totalorder %s24, 0
      %p81 = por %p79, %p80
      %p82 = scmp.ne.s32.totalorder %s74, %s76
      %p83 = scmp.eq.s32.totalorder %s29, 1
      %p84 = por %p82, %p83
      %p85 = scmp.ne.s32.totalorder %s76, %s77
      %p86 = scmp.eq.s32.totalorder %s29, 0
      %p87 = por %p85, %p86
      %p88 = scmp.ne.s32.totalorder %s76, %s77
      %p89 = scmp.eq.s32.totalorder %s30, 1
      %p90 = por %p88, %p89
      %p92 = scmp.ne.s32.totalorder %s77, %s91
      %p93 = scmp.eq.s32.totalorder %s30, 0
      %p94 = por %p92, %p93
      %s95 = ssub.s32 %s24, %s31
      %p96 = scmp.eq.s32.totalorder %s95, 0
      %s98 = sadd.s32 %s97, 1
      %s99 = scalar_select %p96, %s97, %s98
      %p102 = pneg %p96
      %p103 = scmp.eq.s32.totalorder %s24, 1
      %p104 = por %p102, %p103
      %p105 = scmp.ne.s32.totalorder %s97, %s100
      %p106 = scmp.eq.s32.totalorder %s24, 0
      %p107 = por %p105, %p106
      %p108 = scmp.ne.s32.totalorder %s97, %s100
      %p109 = scmp.eq.s32.totalorder %s29, 1
      %p110 = por %p108, %p109
      %p111 = scmp.ne.s32.totalorder %s100, %s101
      %p112 = scmp.eq.s32.totalorder %s29, 0
      %p113 = por %p111, %p112
      %p114 = scmp.ne.s32.totalorder %s100, %s101
      %p115 = scmp.eq.s32.totalorder %s30, 1
      %p116 = por %p114, %p115
      %p118 = scmp.ne.s32.totalorder %s101, %s117
      %p119 = scmp.eq.s32.totalorder %s30, 0
      %p120 = por %p118, %p119
      %s121 = ssub.s32 %s24, %s31
      %p122 = scmp.eq.s32.totalorder %s121, 0
      %s124 = sadd.s32 %s123, 1
      %s125 = scalar_select %p122, %s123, %s124
      %p128 = pneg %p122
      %p129 = scmp.eq.s32.totalorder %s24, 1
      %p130 = por %p128, %p129
      %p131 = scmp.ne.s32.totalorder %s123, %s126
      %p132 = scmp.eq.s32.totalorder %s24, 0
      %p133 = por %p131, %p132
      %p134 = scmp.ne.s32.totalorder %s123, %s126
      %p135 = scmp.eq.s32.totalorder %s29, 1
      %p136 = por %p134, %p135
      %p137 = scmp.ne.s32.totalorder %s126, %s127
      %p138 = scmp.eq.s32.totalorder %s29, 0
      %p139 = por %p137, %p138
      %p140 = scmp.ne.s32.totalorder %s126, %s127
      %p141 = scmp.eq.s32.totalorder %s30, 1
      %p142 = por %p140, %p141
      %p144 = scmp.ne.s32.totalorder %s127, %s143
      %p145 = scmp.eq.s32.totalorder %s30, 0
      %p146 = por %p144, %p145
      %s147 = ssub.s32 %s24, %s31
      %p148 = scmp.eq.s32.totalorder %s147, 0
      %s150 = sadd.s32 %s149, 1
      %s151 = scalar_select %p148, %s149, %s150
      %p154 = pneg %p148
      %p155 = scmp.eq.s32.totalorder %s24, 1
      %p156 = por %p154, %p155
      %p157 = scmp.ne.s32.totalorder %s149, %s152
      %p158 = scmp.eq.s32.totalorder %s24, 0
      %p159 = por %p157, %p158
      %p160 = scmp.ne.s32.totalorder %s149, %s152
      %p161 = scmp.eq.s32.totalorder %s29, 1
      %p162 = por %p160, %p161
      %p163 = scmp.ne.s32.totalorder %s152, %s153
      %p164 = scmp.eq.s32.totalorder %s29, 0
      %p165 = por %p163, %p164
      %p166 = scmp.ne.s32.totalorder %s152, %s153
      %p167 = scmp.eq.s32.totalorder %s30, 1
      %p168 = por %p166, %p167
      %p170 = scmp.ne.s32.totalorder %s153, %s169
      %p171 = scmp.eq.s32.totalorder %s30, 0
      %p172 = por %p170, %p171
      %s173 = ssub.s32 %s24, %s31
      %p174 = scmp.eq.s32.totalorder %s173, 0
      %s176 = sadd.s32 %s175, 1
      %s177 = scalar_select %p174, %s175, %s176
      %p180 = pneg %p174
      %p181 = scmp.eq.s32.totalorder %s24, 1
      %p182 = por %p180, %p181
      %p183 = scmp.ne.s32.totalorder %s175, %s178
      %p184 = scmp.eq.s32.totalorder %s24, 0
      %p185 = por %p183, %p184
      %p186 = scmp.ne.s32.totalorder %s175, %s178
      %p187 = scmp.eq.s32.totalorder %s29, 1
      %p188 = por %p186, %p187
      %p189 = scmp.ne.s32.totalorder %s178, %s179
      %p190 = scmp.eq.s32.totalorder %s29, 0
      %p191 = por %p189, %p190
      %p192 = scmp.ne.s32.totalorder %s178, %s179
      %p193 = scmp.eq.s32.totalorder %s30, 1
      %p194 = por %p192, %p193
      %p196 = scmp.ne.s32.totalorder %s179, %s195
      %p197 = scmp.eq.s32.totalorder %s30, 0
      %p198 = por %p196, %p197
      %s199 = ssub.s32 %s24, %s31
      %p200 = scmp.eq.s32.totalorder %s199, 0
      %s202 = sadd.s32 %s201, 1
      %s203 = scalar_select %p200, %s201, %s202
      %p206 = pneg %p200
      %p207 = scmp.eq.s32.totalorder %s24, 1
      %p208 = por %p206, %p207
      %p209 = scmp.ne.s32.totalorder %s201, %s204
      %p210 = scmp.eq.s32.totalorder %s24, 0
      %p211 = por %p209, %p210
      %p212 = scmp.ne.s32.totalorder %s201, %s204
      %p213 = scmp.eq.s32.totalorder %s29, 1
      %p214 = por %p212, %p213
      %p215 = scmp.ne.s32.totalorder %s204, %s205
      %p216 = scmp.eq.s32.totalorder %s29, 0
      %p217 = por %p215, %p216
      %p218 = scmp.ne.s32.totalorder %s204, %s205
      %p219 = scmp.eq.s32.totalorder %s30, 1
      %p220 = por %p218, %p219
      %p222 = scmp.ne.s32.totalorder %s205, %s221
      %p223 = scmp.eq.s32.totalorder %s30, 0
      %p224 = por %p222, %p223
      %s225 = ssub.s32 %s24, %s31
      %p226 = scmp.eq.s32.totalorder %s225, 0
      %s228 = sadd.s32 %s227, 1
      %s229 = scalar_select %p226, %s227, %s228
      %p232 = pneg %p226
      %p233 = scmp.eq.s32.totalorder %s24, 1
      %p234 = por %p232, %p233
      %p235 = scmp.ne.s32.totalorder %s227, %s230
      %p236 = scmp.eq.s32.totalorder %s24, 0
      %p237 = por %p235, %p236
      %p238 = scmp.ne.s32.totalorder %s227, %s230
      %p239 = scmp.eq.s32.totalorder %s29, 1
      %p240 = por %p238, %p239
      %p241 = scmp.ne.s32.totalorder %s230, %s231
      %p242 = scmp.eq.s32.totalorder %s29, 0
      %p243 = por %p241, %p242
      %p244 = scmp.ne.s32.totalorder %s230, %s231
      %p245 = scmp.eq.s32.totalorder %s30, 1
      %p246 = por %p244, %p245
      %p248 = scmp.ne.s32.totalorder %s231, %s247
      %p249 = scmp.eq.s32.totalorder %s30, 0
      %p250 = por %p248, %p249
      %s251 = ssub.s32 %s24, %s31
      %p252 = scmp.eq.s32.totalorder %s251, 0
      %s254 = sadd.s32 %s253, 1
      %s255 = scalar_select %p252, %s253, %s254
      %p258 = pneg %p252
      %p259 = scmp.eq.s32.totalorder %s24, 1
      %p260 = por %p258, %p259
      %p261 = scmp.ne.s32.totalorder %s253, %s256
      %p262 = scmp.eq.s32.totalorder %s24, 0
      %p263 = por %p261, %p262
      %p264 = scmp.ne.s32.totalorder %s253, %s256
      %p265 = scmp.eq.s32.totalorder %s29, 1
      %p266 = por %p264, %p265
      %p267 = scmp.ne.s32.totalorder %s256, %s257
      %p268 = scmp.eq.s32.totalorder %s29, 0
      %p269 = por %p267, %p268
      %p270 = scmp.ne.s32.totalorder %s256, %s257
      %p271 = scmp.eq.s32.totalorder %s30, 1
      %p272 = por %p270, %p271
      %p274 = scmp.ne.s32.totalorder %s257, %s273
      %p275 = scmp.eq.s32.totalorder %s30, 0
      %p276 = por %p274, %p275
      %s277 = ssub.s32 %s24, %s31
      %p278 = scmp.eq.s32.totalorder %s277, 0
      %s280 = sadd.s32 %s279, 1
      %s281 = scalar_select %p278, %s279, %s280
      %p284 = pneg %p278
      %p285 = scmp.eq.s32.totalorder %s24, 1
      %p286 = por %p284, %p285
      %p287 = scmp.ne.s32.totalorder %s279, %s282
      %p288 = scmp.eq.s32.totalorder %s24, 0
      %p289 = por %p287, %p288
      %p290 = scmp.ne.s32.totalorder %s279, %s282
      %p291 = scmp.eq.s32.totalorder %s29, 1
      %p292 = por %p290, %p291
      %p293 = scmp.ne.s32.totalorder %s282, %s283
      %p294 = scmp.eq.s32.totalorder %s29, 0
      %p295 = por %p293, %p294
      %p296 = scmp.ne.s32.totalorder %s282, %s283
      %p297 = scmp.eq.s32.totalorder %s30, 1
      %p298 = por %p296, %p297
      %p300 = scmp.ne.s32.totalorder %s283, %s299
      %p301 = scmp.eq.s32.totalorder %s30, 0
      %p302 = por %p300, %p301
      %s303 = ssub.s32 %s24, %s31
      %p304 = scmp.eq.s32.totalorder %s303, 0
      %s306 = sadd.s32 %s305, 1
      %s307 = scalar_select %p304, %s305, %s306
      %p310 = pneg %p304
      %p311 = scmp.eq.s32.totalorder %s24, 1
      %p312 = por %p310, %p311
      %p313 = scmp.ne.s32.totalorder %s305, %s308
      %p314 = scmp.eq.s32.totalorder %s24, 0
      %p315 = por %p313, %p314
      %p316 = scmp.ne.s32.totalorder %s305, %s308
      %p317 = scmp.eq.s32.totalorder %s29, 1
      %p318 = por %p316, %p317
      %p319 = scmp.ne.s32.totalorder %s308, %s309
      %p320 = scmp.eq.s32.totalorder %s29, 0
      %p321 = por %p319, %p320
      %p322 = scmp.ne.s32.totalorder %s308, %s309
      %p323 = scmp.eq.s32.totalorder %s30, 1
      %p324 = por %p322, %p323
      %p326 = scmp.ne.s32.totalorder %s309, %s325
      %p327 = scmp.eq.s32.totalorder %s30, 0
      %p328 = por %p326, %p327
      %s329 = ssub.s32 %s24, %s31
      %p330 = scmp.eq.s32.totalorder %s329, 0
      %s332 = sadd.s32 %s331, 1
      %s333 = scalar_select %p330, %s331, %s332
      %p336 = pneg %p330
      %p337 = scmp.eq.s32.totalorder %s24, 1
      %p338 = por %p336, %p337
      %p339 = scmp.ne.s32.totalorder %s331, %s334
      %p340 = scmp.eq.s32.totalorder %s24, 0
      %p341 = por %p339, %p340
      %p342 = scmp.ne.s32.totalorder %s331, %s334
      %p343 = scmp.eq.s32.totalorder %s29, 1
      %p344 = por %p342, %p343
      %p345 = scmp.ne.s32.totalorder %s334, %s335
      %p346 = scmp.eq.s32.totalorder %s29, 0
      %p347 = por %p345, %p346
      %p348 = scmp.ne.s32.totalorder %s334, %s335
      %p349 = scmp.eq.s32.totalorder %s30, 1
      %p350 = por %p348, %p349
      %p352 = scmp.ne.s32.totalorder %s335, %s351
      %p353 = scmp.eq.s32.totalorder %s30, 0
      %p354 = por %p352, %p353
      %s355 = ssub.s32 %s24, %s31
      %p356 = scmp.eq.s32.totalorder %s355, 0
      %s358 = sadd.s32 %s357, 1
      %s359 = scalar_select %p356, %s357, %s358
      %p362 = pneg %p356
      %p363 = scmp.eq.s32.totalorder %s24, 1
      %p364 = por %p362, %p363
      %p365 = scmp.ne.s32.totalorder %s357, %s360
      %p366 = scmp.eq.s32.totalorder %s24, 0
      %p367 = por %p365, %p366
      %p368 = scmp.ne.s32.totalorder %s357, %s360
      %p369 = scmp.eq.s32.totalorder %s29, 1
      %p370 = por %p368, %p369
      %p371 = scmp.ne.s32.totalorder %s360, %s361
      %p372 = scmp.eq.s32.totalorder %s29, 0
      %p373 = por %p371, %p372
      %p374 = scmp.ne.s32.totalorder %s360, %s361
      %p375 = scmp.eq.s32.totalorder %s30, 1
      %p376 = por %p374, %p375
      %p378 = scmp.ne.s32.totalorder %s361, %s377
      %p379 = scmp.eq.s32.totalorder %s30, 0
      %p380 = por %p378, %p379
      %s381 = ssub.s32 %s24, %s31
      %p382 = scmp.eq.s32.totalorder %s381, 0
      %s384 = sadd.s32 %s383, 1
      %s385 = scalar_select %p382, %s383, %s384
      %p388 = pneg %p382
      %p389 = scmp.eq.s32.totalorder %s24, 1
      %p390 = por %p388, %p389
      %p391 = scmp.ne.s32.totalorder %s383, %s386
      %p392 = scmp.eq.s32.totalorder %s24, 0
      %p393 = por %p391, %p392
      %p394 = scmp.ne.s32.totalorder %s383, %s386
      %p395 = scmp.eq.s32.totalorder %s29, 1
      %p396 = por %p394, %p395
      %p397 = scmp.ne.s32.totalorder %s386, %s387
      %p398 = scmp.eq.s32.totalorder %s29, 0
      %p399 = por %p397, %p398
      %p400 = scmp.ne.s32.totalorder %s386, %s387
      %p401 = scmp.eq.s32.totalorder %s30, 1
      %p402 = por %p400, %p401
      %p404 = scmp.ne.s32.totalorder %s387, %s403
      %p405 = scmp.eq.s32.totalorder %s30, 0
      %p406 = por %p404, %p405
      %s408 = sadd.s32 %s407, 1
      %p411 = scmp.eq.s32.totalorder %s24, 1
      %p412 = scmp.ne.s32.totalorder %s407, %s409
      %p413 = scmp.eq.s32.totalorder %s24, 0
      %p414 = por %p412, %p413
      %p415 = scmp.ne.s32.totalorder %s407, %s409
      %p416 = scmp.eq.s32.totalorder %s29, 1
      %p417 = por %p415, %p416
      %p418 = scmp.ne.s32.totalorder %s409, %s410
      %p419 = scmp.eq.s32.totalorder %s29, 0
      %p420 = por %p418, %p419
      %p421 = scmp.ne.s32.totalorder %s409, %s410
      %p422 = scmp.eq.s32.totalorder %s30, 1
      %p423 = por %p421, %p422
      %p425 = scmp.ne.s32.totalorder %s410, %s424
      %p426 = scmp.eq.s32.totalorder %s30, 0
      %p427 = por %p425, %p426
      %s429 = sadd.s32 %s428, 1
      %p432 = scmp.eq.s32.totalorder %s24, 1
      %p433 = scmp.ne.s32.totalorder %s428, %s430
      %p434 = scmp.eq.s32.totalorder %s24, 0
      %p435 = por %p433, %p434
      %p436 = scmp.ne.s32.totalorder %s428, %s430
      %p437 = scmp.eq.s32.totalorder %s29, 1
      %p438 = por %p436, %p437
      %p439 = scmp.ne.s32.totalorder %s430, %s431
      %p440 = scmp.eq.s32.totalorder %s29, 0
      %p441 = por %p439, %p440
      %p442 = scmp.ne.s32.totalorder %s430, %s431
      %p443 = scmp.eq.s32.totalorder %s30, 1
      %p444 = por %p442, %p443
      %p446 = scmp.ne.s32.totalorder %s431, %s445
      %p447 = scmp.eq.s32.totalorder %s30, 0
      %p448 = por %p446, %p447
      %s450 = sadd.s32 %s449, 1
      %p453 = scmp.eq.s32.totalorder %s24, 1
      %p454 = scmp.ne.s32.totalorder %s449, %s451
      %p455 = scmp.eq.s32.totalorder %s24, 0
      %p456 = por %p454, %p455
      %p457 = scmp.ne.s32.totalorder %s449, %s451
      %p458 = scmp.eq.s32.totalorder %s29, 1
      %p459 = por %p457, %p458
      %p460 = scmp.ne.s32.totalorder %s451, %s452
      %p461 = scmp.eq.s32.totalorder %s29, 0
      %p462 = por %p460, %p461
      %p463 = scmp.ne.s32.totalorder %s451, %s452
      %p464 = scmp.eq.s32.totalorder %s30, 1
      %p465 = por %p463, %p464
      %p467 = scmp.ne.s32.totalorder %s452, %s466
      %p468 = scmp.eq.s32.totalorder %s30, 0
      %p469 = por %p467, %p468
      %p470 = scmp.le.s32.totalorder 1, %s24
      %p471 = scmp.lt.s32.totalorder %s24, 3
      %p472 = pnand %p470, %p471
      %p473 = pneg %p472
      // Predicated region
      $region9: #{tpu_custom_call.1} parent=5 // pred_check
        _
      $region10: #{tpu_custom_call.1} parent=5 // pred_check_branch
        %475 = sbr.rel (%p472) target = $region12
      $region11: #{tpu_custom_call.1} parent=5 // pred_region
        %s476 = ssub.s32 %s24, 1
        // Predicated region
        $region13: #{tpu_custom_call.1} parent=11 // pred_check
          %p477 = pneg %p45
        $region14: #{tpu_custom_call.1} parent=11 // pred_check_branch
          %479 = sbr.rel (%p477) target = $region16
        $region15: #{tpu_custom_call.1} parent=11 // pred_region
          _
        $region16: #{tpu_custom_call.1} parent=11 // pred_fallthru
          _
        // Predicated region
        $region17: #{tpu_custom_call.1} parent=11 // pred_check
          %p480 = pneg %p66
        $region18: #{tpu_custom_call.1} parent=11 // pred_check_branch
          %482 = sbr.rel (%p480) target = $region20
        $region19: #{tpu_custom_call.1} parent=11 // pred_region
          _
        $region20: #{tpu_custom_call.1} parent=11 // pred_fallthru
          _
        // Predicated region
        $region21: #{tpu_custom_call.1} parent=11 // pred_check
          %p483 = pneg %p87
        $region22: #{tpu_custom_call.1} parent=11 // pred_check_branch
          %485 = sbr.rel (%p483) target = $region24
        $region23: #{tpu_custom_call.1} parent=11 // pred_region
          _
        $region24: #{tpu_custom_call.1} parent=11 // pred_fallthru
          _
        // Predicated region
        $region25: #{tpu_custom_call.1} parent=11 // pred_check
          %p486 = pneg %p420
        $region26: #{tpu_custom_call.1} parent=11 // pred_check_branch
          %488 = sbr.rel (%p486) target = $region28
        $region27: #{tpu_custom_call.1} parent=11 // pred_region
          _
        $region28: #{tpu_custom_call.1} parent=11 // pred_fallthru
          _
        // Predicated region
        $region29: #{tpu_custom_call.1} parent=11 // pred_check
          %p489 = pneg %p441
        $region30: #{tpu_custom_call.1} parent=11 // pred_check_branch
          %491 = sbr.rel (%p489) target = $region32
        $region31: #{tpu_custom_call.1} parent=11 // pred_region
          _
        $region32: #{tpu_custom_call.1} parent=11 // pred_fallthru
          _
      $region12: #{tpu_custom_call.1} parent=5 // pred_fallthru
        _
      %p492 = scmp.lt.s32.totalorder %s24, 2
      // Predicated region
      $region33: #{tpu_custom_call.1} parent=5 // pred_check
        %p493 = pneg %p492
      $region34: #{tpu_custom_call.1} parent=5 // pred_check_branch
        %495 = sbr.rel (%p493) target = $region36
      $region35: #{tpu_custom_call.1} parent=5 // pred_region
        // Predicated region
        $region37: #{tpu_custom_call.1} parent=35 // pred_check
          %p496 = pneg %p107
        $region38: #{tpu_custom_call.1} parent=35 // pred_check_branch
          %498 = sbr.rel (%p496) target = $region40
        $region39: #{tpu_custom_call.1} parent=35 // pred_region
          %p499 = scmp.lt.s32.totalorder %s24, 1
          %s500 = scalar_select %p499, %s24, 1
          %s501 = scalar_lea.vmem %s3, %s500
        $region40: #{tpu_custom_call.1} parent=35 // pred_fallthru
          _
        // Predicated region
        $region41: #{tpu_custom_call.1} parent=35 // pred_check
          %p502 = pneg %p133
        $region42: #{tpu_custom_call.1} parent=35 // pred_check_branch
          %504 = sbr.rel (%p502) target = $region44
        $region43: #{tpu_custom_call.1} parent=35 // pred_region
          %p505 = scmp.lt.s32.totalorder %s24, 1
          %s506 = scalar_select %p505, %s24, 1
          %s507 = scalar_lea.vmem %s4, %s506
        $region44: #{tpu_custom_call.1} parent=35 // pred_fallthru
          _
        // Predicated region
        $region45: #{tpu_custom_call.1} parent=35 // pred_check
          %p508 = pneg %p159
        $region46: #{tpu_custom_call.1} parent=35 // pred_check_branch
          %510 = sbr.rel (%p508) target = $region48
        $region47: #{tpu_custom_call.1} parent=35 // pred_region
          %p511 = scmp.lt.s32.totalorder %s24, 1
          %s512 = scalar_select %p511, %s24, 1
          %s513 = smul.addr %s512, 4
          %s514 = smul.addr %s513, 4
          %s515 = scalar_lea.vmem %s5, %s514
        $region48: #{tpu_custom_call.1} parent=35 // pred_fallthru
          _
        // Predicated region
        $region49: #{tpu_custom_call.1} parent=35 // pred_check
          %p516 = pneg %p185
        $region50: #{tpu_custom_call.1} parent=35 // pred_check_branch
          %518 = sbr.rel (%p516) target = $region52
        $region51: #{tpu_custom_call.1} parent=35 // pred_region
          %p519 = scmp.lt.s32.totalorder %s24, 1
          %s520 = scalar_select %p519, %s24, 1
          %s521 = scalar_lea.vmem %s6, %s520
        $region52: #{tpu_custom_call.1} parent=35 // pred_fallthru
          _
        // Predicated region
        $region53: #{tpu_custom_call.1} parent=35 // pred_check
          %p522 = pneg %p211
        $region54: #{tpu_custom_call.1} parent=35 // pred_check_branch
          %524 = sbr.rel (%p522) target = $region56
        $region55: #{tpu_custom_call.1} parent=35 // pred_region
          %p525 = scmp.lt.s32.totalorder %s24, 1
          %s526 = scalar_select %p525, %s24, 1
          %s527 = smul.addr %s526, 4
          %s528 = smul.addr %s527, 4
          %s529 = scalar_lea.vmem %s7, %s528
        $region56: #{tpu_custom_call.1} parent=35 // pred_fallthru
          _
        // Predicated region
        $region57: #{tpu_custom_call.1} parent=35 // pred_check
          %p530 = pneg %p237
        $region58: #{tpu_custom_call.1} parent=35 // pred_check_branch
          %532 = sbr.rel (%p530) target = $region60
        $region59: #{tpu_custom_call.1} parent=35 // pred_region
          %p533 = scmp.lt.s32.totalorder %s24, 1
          %s534 = scalar_select %p533, %s24, 1
          %s535 = scalar_lea.vmem %s8, %s534
        $region60: #{tpu_custom_call.1} parent=35 // pred_fallthru
          _
        // Predicated region
        $region61: #{tpu_custom_call.1} parent=35 // pred_check
          %p536 = pneg %p263
        $region62: #{tpu_custom_call.1} parent=35 // pred_check_branch
          %538 = sbr.rel (%p536) target = $region64
        $region63: #{tpu_custom_call.1} parent=35 // pred_region
          %p539 = scmp.lt.s32.totalorder %s24, 1
          %s540 = scalar_select %p539, %s24, 1
          %s541 = scalar_lea.vmem %s9, %s540
        $region64: #{tpu_custom_call.1} parent=35 // pred_fallthru
          _
        // Predicated region
        $region65: #{tpu_custom_call.1} parent=35 // pred_check
          %p542 = pneg %p289
        $region66: #{tpu_custom_call.1} parent=35 // pred_check_branch
          %544 = sbr.rel (%p542) target = $region68
        $region67: #{tpu_custom_call.1} parent=35 // pred_region
          %p545 = scmp.lt.s32.totalorder %s24, 1
          %s546 = scalar_select %p545, %s24, 1
          %s547 = scalar_lea.vmem %s10, %s546
        $region68: #{tpu_custom_call.1} parent=35 // pred_fallthru
          _
        // Predicated region
        $region69: #{tpu_custom_call.1} parent=35 // pred_check
          %p548 = pneg %p315
        $region70: #{tpu_custom_call.1} parent=35 // pred_check_branch
          %550 = sbr.rel (%p548) target = $region72
        $region71: #{tpu_custom_call.1} parent=35 // pred_region
          %p551 = scmp.lt.s32.totalorder %s24, 1
          %s552 = scalar_select %p551, %s24, 1
          %s553 = smul.addr %s552, 4
          %s554 = smul.addr %s553, 4
          %s555 = scalar_lea.vmem %s11, %s554
        $region72: #{tpu_custom_call.1} parent=35 // pred_fallthru
          _
        // Predicated region
        $region73: #{tpu_custom_call.1} parent=35 // pred_check
          %p556 = pneg %p341
        $region74: #{tpu_custom_call.1} parent=35 // pred_check_branch
          %558 = sbr.rel (%p556) target = $region76
        $region75: #{tpu_custom_call.1} parent=35 // pred_region
          %p559 = scmp.lt.s32.totalorder %s24, 1
          %s560 = scalar_select %p559, %s24, 1
          %s561 = scalar_lea.vmem %s12, %s560
        $region76: #{tpu_custom_call.1} parent=35 // pred_fallthru
          _
        // Predicated region
        $region77: #{tpu_custom_call.1} parent=35 // pred_check
          %p562 = pneg %p367
        $region78: #{tpu_custom_call.1} parent=35 // pred_check_branch
          %564 = sbr.rel (%p562) target = $region80
        $region79: #{tpu_custom_call.1} parent=35 // pred_region
          %p565 = scmp.lt.s32.totalorder %s24, 1
          %s566 = scalar_select %p565, %s24, 1
          %s567 = smul.addr %s566, 16
          %s568 = smul.addr %s567, 4
          %s569 = scalar_lea.vmem %s13, %s568
        $region80: #{tpu_custom_call.1} parent=35 // pred_fallthru
          _
        // Predicated region
        $region81: #{tpu_custom_call.1} parent=35 // pred_check
          %p570 = pneg %p393
        $region82: #{tpu_custom_call.1} parent=35 // pred_check_branch
          %572 = sbr.rel (%p570) target = $region84
        $region83: #{tpu_custom_call.1} parent=35 // pred_region
          %p573 = scmp.lt.s32.totalorder %s24, 1
          %s574 = scalar_select %p573, %s24, 1
          %s575 = scalar_lea.vmem %s14, %s574
        $region84: #{tpu_custom_call.1} parent=35 // pred_fallthru
          _
      $region36: #{tpu_custom_call.1} parent=5 // pred_fallthru
        _
      %p576 = scmp.le.s32.totalorder 1, %s24
      %p577 = scmp.lt.s32.totalorder %s24, 3
      %p578 = pnand %p576, %p577
      %p579 = pneg %p578
      // Predicated region
      $region85: #{tpu_custom_call.1} parent=5 // pred_check
        _
      $region86: #{tpu_custom_call.1} parent=5 // pred_check_branch
        %581 = sbr.rel (%p578) target = $region88
      $region87: #{tpu_custom_call.1} parent=5 // pred_region
        %s582 = ssub.s32 %s24, 1
        %p583 = pneg %p45
        %p584 = pneg %p42
        %p585 = pneg %p66
        %p586 = pneg %p63
        %p587 = pneg %p87
        %p588 = pneg %p84
        %p589 = scmp.lt.s32.totalorder %s29, 1
        %s590 = scalar_select %p589, %s29, 1
        %s591 = scalar_lea.vmem %s3, %s590
        %p592 = pneg %p113
        %p593 = pneg %p110
        %p594 = scmp.lt.s32.totalorder %s29, 1
        %s595 = scalar_select %p594, %s29, 1
        %s596 = scalar_lea.vmem %s4, %s595
        %p597 = pneg %p139
        %p598 = pneg %p136
        %p599 = scmp.lt.s32.totalorder %s29, 1
        %s600 = scalar_select %p599, %s29, 1
        %s601 = smul.addr %s600, 4
        %s602 = smul.addr %s601, 4
        %s603 = scalar_lea.vmem %s5, %s602
        %p604 = pneg %p165
        %p605 = pneg %p162
        %p606 = scmp.lt.s32.totalorder %s29, 1
        %s607 = scalar_select %p606, %s29, 1
        %s608 = scalar_lea.vmem %s6, %s607
        %p609 = pneg %p191
        %p610 = pneg %p188
        %p611 = scmp.lt.s32.totalorder %s29, 1
        %s612 = scalar_select %p611, %s29, 1
        %s613 = smul.addr %s612, 4
        %s614 = smul.addr %s613, 4
        %s615 = scalar_lea.vmem %s7, %s614
        %p616 = pneg %p217
        %p617 = pneg %p214
        %p618 = scmp.lt.s32.totalorder %s29, 1
        %s619 = scalar_select %p618, %s29, 1
        %s620 = scalar_lea.vmem %s8, %s619
        %p621 = pneg %p243
        %p622 = pneg %p240
        %p623 = scmp.lt.s32.totalorder %s29, 1
        %s624 = scalar_select %p623, %s29, 1
        %s625 = scalar_lea.vmem %s9, %s624
        %p626 = pneg %p269
        %p627 = pneg %p266
        %p628 = scmp.lt.s32.totalorder %s29, 1
        %s629 = scalar_select %p628, %s29, 1
        %s630 = scalar_lea.vmem %s10, %s629
        %p631 = pneg %p295
        %p632 = pneg %p292
        %p633 = scmp.lt.s32.totalorder %s29, 1
        %s634 = scalar_select %p633, %s29, 1
        %s635 = smul.addr %s634, 4
        %s636 = smul.addr %s635, 4
        %s637 = scalar_lea.vmem %s11, %s636
        %p638 = pneg %p321
        %p639 = pneg %p318
        %p640 = scmp.lt.s32.totalorder %s29, 1
        %s641 = scalar_select %p640, %s29, 1
        %s642 = scalar_lea.vmem %s12, %s641
        %p643 = pneg %p347
        %p644 = pneg %p344
        %p645 = scmp.lt.s32.totalorder %s29, 1
        %s646 = scalar_select %p645, %s29, 1
        %s647 = smul.addr %s646, 16
        %s648 = smul.addr %s647, 4
        %s649 = scalar_lea.vmem %s13, %s648
        %p650 = pneg %p373
        %p651 = pneg %p370
        %p652 = scmp.lt.s32.totalorder %s29, 1
        %s653 = scalar_select %p652, %s29, 1
        %s654 = scalar_lea.vmem %s14, %s653
        %p655 = pneg %p399
        %p656 = pneg %p396
        %p657 = pneg %p420
        %p658 = pneg %p417
        %p659 = pneg %p441
        %p660 = pneg %p438
        %p661 = pneg %p462
        %p662 = pneg %p459
        %p663 = scmp.lt.s32.totalorder %s29, 1
        %s664 = scalar_select %p663, %s29, 1
        %s665 = scalar_lea.vmem %s3, %s664
        %p666 = scmp.lt.s32.totalorder %s29, 1
        %s667 = scalar_select %p666, %s29, 1
        %s668 = scalar_lea.vmem %s4, %s667
        %p669 = scmp.lt.s32.totalorder %s29, 1
        %s670 = scalar_select %p669, %s29, 1
        %s671 = smul.addr %s670, 4
        %s672 = smul.addr %s671, 4
        %s673 = scalar_lea.vmem %s5, %s672
        %p674 = scmp.lt.s32.totalorder %s29, 1
        %s675 = scalar_select %p674, %s29, 1
        %s676 = scalar_lea.vmem %s6, %s675
        %p677 = scmp.lt.s32.totalorder %s29, 1
        %s678 = scalar_select %p677, %s29, 1
        %s679 = smul.addr %s678, 4
        %s680 = smul.addr %s679, 4
        %s681 = scalar_lea.vmem %s7, %s680
        %p682 = scmp.lt.s32.totalorder %s29, 1
        %s683 = scalar_select %p682, %s29, 1
        %s684 = scalar_lea.vmem %s8, %s683
        %p685 = scmp.lt.s32.totalorder %s29, 1
        %s686 = scalar_select %p685, %s29, 1
        %s687 = scalar_lea.vmem %s9, %s686
        %p688 = scmp.lt.s32.totalorder %s29, 1
        %s689 = scalar_select %p688, %s29, 1
        %s690 = scalar_lea.vmem %s10, %s689
        %p691 = scmp.lt.s32.totalorder %s29, 1
        %s692 = scalar_select %p691, %s29, 1
        %s693 = smul.addr %s692, 4
        %s694 = smul.addr %s693, 4
        %s695 = scalar_lea.vmem %s11, %s694
        %p696 = scmp.lt.s32.totalorder %s29, 1
        %s697 = scalar_select %p696, %s29, 1
        %s698 = scalar_lea.vmem %s12, %s697
        %p699 = scmp.lt.s32.totalorder %s29, 1
        %s700 = scalar_select %p699, %s29, 1
        %s701 = smul.addr %s700, 16
        %s702 = smul.addr %s701, 4
        %s703 = scalar_lea.vmem %s13, %s702
        %p704 = scmp.lt.s32.totalorder %s29, 1
        %s705 = scalar_select %p704, %s29, 1
        %s706 = scalar_lea.vmem %s14, %s705
        %p708 = scmp.eq.s32.totalorder %s29, 0
        // Predicated region
        $region89: #{tpu_custom_call.1} parent=87 // pred_check
          %p709 = pneg %p708
        $region90: #{tpu_custom_call.1} parent=87 // pred_check_branch
          %711 = sbr.rel (%p709) target = $region92
        $region91: #{tpu_custom_call.1} parent=87 // pred_region
          %v712 = vld [vmem:[%s0] sm:$0xff]
          %v713 = vld [vmem:[%s0 + $0x8] sm:$0xff]
          %v714 = vlaneseq
          %v715 = vand.u32 %v714, 127
          %716 = vset.pattern.permute.xlu0 0
          %717 = vperm.xlu0 %716, %v712
          %v718 = vpop.permute.xlu0 %717
          %719 = vset.pattern.permute.xlu0 0
          %720 = vperm.xlu0 %719, %v713
          %v721 = vpop.permute.xlu0 %720
          %vm722 = vcmp.eq.s32.totalorder %v718, %v715
          %vm723 = vcmp.eq.s32.totalorder %v721, %v715
          %v724 = vsel %vm722, 1, 0
          %v725 = vsel %vm723, 1, 0
          %v726 = vcvt.s32.f32 %v724
          %v727 = vcvt.s32.f32 %v725
          %v728 = vld [vmem:[%s1] sm:$0xff]
          %v729 = vld [vmem:[%s1 + $0x8] sm:$0xff]
          %v730 = vld [vmem:[%s1 + $0x10] sm:$0xff]
          %v731 = vld [vmem:[%s1 + $0x18] sm:$0xff]
          %v732 = vld [vmem:[%s1 + $0x20] sm:$0xff]
          %v733 = vld [vmem:[%s1 + $0x28] sm:$0xff]
          %v734 = vld [vmem:[%s1 + $0x30] sm:$0xff]
          %v735 = vld [vmem:[%s1 + $0x38] sm:$0xff]
          %v736 = vld [vmem:[%s1 + $0x40] sm:$0xff]
          %v737 = vld [vmem:[%s1 + $0x48] sm:$0xff]
          %v738 = vld [vmem:[%s1 + $0x50] sm:$0xff]
          %v739 = vld [vmem:[%s1 + $0x58] sm:$0xff]
          %v740 = vld [vmem:[%s1 + $0x60] sm:$0xff]
          %v741 = vld [vmem:[%s1 + $0x68] sm:$0xff]
          %v742 = vld [vmem:[%s1 + $0x70] sm:$0xff]
          %v743 = vld [vmem:[%s1 + $0x78] sm:$0xff]
          %v744 = vld [vmem:[%s2] sm:$0xff]
          %745 = vmatpush.msra.mxu0 %v743
          %746 = vmatpush.msra.mxu0 %v742
          %747 = vmatpush.msra.mxu0 %v741
          %748 = vmatpush.msra.mxu0 %v740
          %749 = vmatpush.msra.mxu0 %v739
          %750 = vmatpush.msra.mxu0 %v738
          %751 = vmatpush.msra.mxu0 %v737
          %752 = vmatpush.msra.mxu0 %v736
          %753 = vmatpush.msra.mxu0 %v735
          %754 = vmatpush.msra.mxu0 %v734
          %755 = vmatpush.msra.mxu0 %v733
          %756 = vmatpush.msra.mxu0 %v732
          %757 = vmatpush.msra.mxu0 %v731
          %758 = vmatpush.msra.mxu0 %v730
          %759 = vmatpush.msra.mxu0 %v729
          %760 = vmatpush.msra.mxu0 %v728
          %761 = vmatmul.f32.gmra.mxu0 %v726
          %v762 = vpop.f32.mrf.mxu0
          %v763 = vadd.f32 %v744, %v762
          %764 = vmatmul.f32.gmra.mxu0 %v727
          %v765 = vpop.f32.mrf.mxu0
          %v766 = vadd.f32 %v744, %v765
          %767 = vdwg.mxu0
          %vm768 = vcmask 261120
          %769 = vst.msk [vmem:[#allocation2] sm:$0xff] %vm768, %v763
          %770 = vst.msk [vmem:[#allocation2 + $0x8] sm:$0xff] %vm768, %v766
        $region92: #{tpu_custom_call.1} parent=87 // pred_fallthru
          _
        %v771 = vld [vmem:[#allocation2] sm:$0xff]
        %v772 = vld [vmem:[#allocation2 + $0x8] sm:$0xff]
        %v773 = vld [vmem:[%s665] sm:$0x1]
        %v774 = vld [vmem:[%s668] sm:$0x1]
        %vm775 = vcmask 261120
        %v776 = vsel %vm775, %v771, 0.0
        %777 = vadd.xlane.f32.xlu0 %v776
        %v778 = vpop.xlane.xlu0 %777
        %v779 = vsel %vm775, %v772, 0.0
        %780 = vadd.xlane.f32.xlu0 %v779
        %v781 = vpop.xlane.xlu0 %780
        %v782 = vrcp.pop 32.0
        %v783 = vmul.f32 32.0, %v782
        %v784 = vsub.f32 1.0, %v783
        %v785 = vmul.f32 %v782, %v784
        %v786 = vadd.f32 %v782, %v785
        %vm787 = vweird.f32 %v782
        %v788 = vsel %vm787, %v782, %v786
        %v789 = vmul.f32 %v778, %v788
        %v790 = vmul.f32 %v781, %v788
        %v791 = vsub.f32 %v771, %v789
        %v792 = vsub.f32 %v772, %v790
        %v793 = vmul.f32 %v791, %v791
        %v794 = vmul.f32 %v792, %v792
        %v795 = vsel %vm775, %v793, 0.0
        %796 = vadd.xlane.f32.xlu0 %v795
        %v797 = vpop.xlane.xlu0 %796
        %v798 = vsel %vm775, %v794, 0.0
        %799 = vadd.xlane.f32.xlu0 %v798
        %v800 = vpop.xlane.xlu0 %799
        %v801 = vmul.f32 %v797, %v788
        %v802 = vmul.f32 %v800, %v788
        %v803 = vadd.f32 %v801, 1e-05
        %v804 = vadd.f32 %v802, 1e-05
        %v805 = vrsqrt.pop %v803
        %v806 = vmul.f32 %v805, %v803
        %v807 = vmul.f32 %v806, %v805
        %v808 = vmul.f32 0.5, %v807
        %v809 = vsub.f32 1.5, %v808
        %v810 = vmul.f32 %v805, %v809
        %vm811 = vweird.f32 %v803
        %vm812 = vweird.f32 %v805
        %vm813 = vmor %vm811, %vm812
        %v814 = vsel %vm813, %v805, %v810
        %v815 = vrsqrt.pop %v804
        %v816 = vmul.f32 %v815, %v804
        %v817 = vmul.f32 %v816, %v815
        %v818 = vmul.f32 0.5, %v817
        %v819 = vsub.f32 1.5, %v818
        %v820 = vmul.f32 %v815, %v819
        %vm821 = vweird.f32 %v804
        %vm822 = vweird.f32 %v815
        %vm823 = vmor %vm821, %vm822
        %v824 = vsel %vm823, %v815, %v820
        %v825 = vmul.f32 %v791, %v814
        %v826 = vmul.f32 %v792, %v824
        %v828 = vperm.slane %v773, 0
        %v830 = vmul.f32 %v825, %v828
        %v831 = vmul.f32 %v826, %v828
        %v833 = vperm.slane %v774, 0
        %v835 = vadd.f32 %v830, %v833
        %v836 = vadd.f32 %v831, %v833
        %v837 = vpack.c.bf16 %v836, %v835
        %v838 = vld [vmem:[%s673] sm:$0xf]
        %v839 = vld [vmem:[%s673 + $0x4] sm:$0xf]
        %v840 = vld [vmem:[%s673 + $0x8] sm:$0xf]
        %v841 = vld [vmem:[%s673 + $0xc] sm:$0xf]
        %v842 = vld [vmem:[%s676] sm:$0x1]
        %v844 = vperm.slane %v842, 0
        %v850 = vunpack.c.l.b16 %v838
        %v851 = vunpack.c.l.b16 %v839
        %v852 = vunpack.c.l.b16 %v840
        %v853 = vunpack.c.l.b16 %v841
        %v854 = vpack.c.b16 %v851, %v850
        %v855 = vpack.c.b16 %v853, %v852
        %v859 = vsel %vm775, %v837, 0
        %861 = vmatpush.bf16.msra.mxu0 0
        %862 = vmatpush.bf16.msra.mxu0 0
        %863 = vmatpush.bf16.msra.mxu0 0
        %864 = vmatpush.bf16.msra.mxu0 0
        %865 = vmatpush.bf16.msra.mxu0 0
        %866 = vmatpush.bf16.msra.mxu0 0
        %867 = vmatpush.bf16.msra.mxu0 %v855
        %868 = vmatpush.bf16.msra.mxu0 %v854
        %869 = vmatmul.bf16.gmra.mxu0 %v859
        %v870 = vpop.f32.mrf.mxu0
        %v871 = vadd.f32 %v844, %v870
        %v872 = vpop.f32.mrf.mxu0
        %v873 = vadd.f32 %v844, %v872
        %874 = vdwg.mxu0
        %877 = vrot.lane.b32.xlu0 %v871, 120
        %v878 = vpop.permute.xlu0 %877
        %879 = vrot.lane.b32.xlu0 %v873, 120
        %v880 = vpop.permute.xlu0 %879
        %883 = vrot.lane.b32.xlu0 %v871, 112
        %v884 = vpop.permute.xlu0 %883
        %885 = vrot.lane.b32.xlu0 %v873, 112
        %v886 = vpop.permute.xlu0 %885
        %889 = vrot.lane.b32.xlu0 %v871, 104
        %v890 = vpop.permute.xlu0 %889
        %891 = vrot.lane.b32.xlu0 %v873, 104
        %v892 = vpop.permute.xlu0 %891
        %v895 = vlaneseq
        %v896 = vshrl.u32 %v895, 7
        %v897 = vlaneseq
        %v898 = vand.u32 %v897, 127
        %vm899 = vcmp.le.s32.totalorder %v898, %v896
        %v900 = vsel %vm899, 0.0, -1e+30
        %v901 = vpack.c.bf16 %v871, %v871
        %v902 = vpack.c.bf16 %v873, %v873
        %v903 = vpack.c.bf16 %v878, %v878
        %v904 = vpack.c.bf16 %v880, %v880
        %v905 = vpack.c.bf16 %v884, %v884
        %v906 = vpack.c.bf16 %v886, %v886
        %v907 = vpack.c.bf16 %v890, %v890
        %v908 = vpack.c.bf16 %v892, %v892
        %v910 = vunpack.c.l.b16 %v901
        %v911 = vpack.c.b16 %v910, %v910
        %912 = vrot.lane.b32.xlu0 %v911, 96
        %v913 = vpop.permute.xlu0 %912
        %vm914 = vcmask 64512
        %v916 = vsel %vm914, %v901, 0
        %v919 = vsel %vm914, %v913, 0
        %921 = vmatpush.bf16.xpose.msra.mxu0 0
        %922 = vmatpush.bf16.xpose.msra.mxu0 0
        %923 = vmatpush.bf16.xpose.msra.mxu0 0
        %924 = vmatpush.bf16.xpose.msra.mxu0 0
        %925 = vmatpush.bf16.xpose.msra.mxu0 0
        %926 = vmatpush.bf16.xpose.msra.mxu0 0
        %927 = vmatpush.bf16.xpose.msra.mxu0 0
        %928 = vmatpush.bf16.xpose.msra.mxu0 %v919
        %929 = vmatmul.bf16.gmra.mxu0 %v916
        %v930 = vpop.f32.mrf.mxu0
        %v931 = vadd.f32 %v900, %v930
        %v932 = vpop.f32.mrf.mxu0
        %933 = vdwg.mxu0
        %v935 = vunpack.c.l.b16 %v902
        %v936 = vpack.c.b16 %v935, %v935
        %937 = vrot.lane.b32.xlu0 %v936, 96
        %v938 = vpop.permute.xlu0 %937
        %v940 = vsel %vm914, %v902, 0
        %v943 = vsel %vm914, %v938, 0
        %945 = vmatpush.bf16.xpose.msra.mxu0 0
        %946 = vmatpush.bf16.xpose.msra.mxu0 0
        %947 = vmatpush.bf16.xpose.msra.mxu0 0
        %948 = vmatpush.bf16.xpose.msra.mxu0 0
        %949 = vmatpush.bf16.xpose.msra.mxu0 0
        %950 = vmatpush.bf16.xpose.msra.mxu0 0
        %951 = vmatpush.bf16.xpose.msra.mxu0 0
        %952 = vmatpush.bf16.xpose.msra.mxu0 %v943
        %953 = vmatmul.bf16.gmra.mxu0 %v940
        %v954 = vpop.f32.mrf.mxu0
        %v955 = vadd.f32 %v900, %v954
        %v956 = vpop.f32.mrf.mxu0
        %957 = vdwg.mxu0
        %v959 = vunpack.c.l.b16 %v903
        %v960 = vpack.c.b16 %v959, %v959
        %961 = vrot.lane.b32.xlu0 %v960, 96
        %v962 = vpop.permute.xlu0 %961
        %v964 = vsel %vm914, %v903, 0
        %v967 = vsel %vm914, %v962, 0
        %969 = vmatpush.bf16.xpose.msra.mxu0 0
        %970 = vmatpush.bf16.xpose.msra.mxu0 0
        %971 = vmatpush.bf16.xpose.msra.mxu0 0
        %972 = vmatpush.bf16.xpose.msra.mxu0 0
        %973 = vmatpush.bf16.xpose.msra.mxu0 0
        %974 = vmatpush.bf16.xpose.msra.mxu0 0
        %975 = vmatpush.bf16.xpose.msra.mxu0 0
        %976 = vmatpush.bf16.xpose.msra.mxu0 %v967
        %977 = vmatmul.bf16.gmra.mxu0 %v964
        %v978 = vpop.f32.mrf.mxu0
        %v979 = vadd.f32 %v900, %v978
        %v980 = vpop.f32.mrf.mxu0
        %981 = vdwg.mxu0
        %v983 = vunpack.c.l.b16 %v904
        %v984 = vpack.c.b16 %v983, %v983
        %985 = vrot.lane.b32.xlu0 %v984, 96
        %v986 = vpop.permute.xlu0 %985
        %v988 = vsel %vm914, %v904, 0
        %v991 = vsel %vm914, %v986, 0
        %993 = vmatpush.bf16.xpose.msra.mxu0 0
        %994 = vmatpush.bf16.xpose.msra.mxu0 0
        %995 = vmatpush.bf16.xpose.msra.mxu0 0
        %996 = vmatpush.bf16.xpose.msra.mxu0 0
        %997 = vmatpush.bf16.xpose.msra.mxu0 0
        %998 = vmatpush.bf16.xpose.msra.mxu0 0
        %999 = vmatpush.bf16.xpose.msra.mxu0 0
        %1000 = vmatpush.bf16.xpose.msra.mxu0 %v991
        %1001 = vmatmul.bf16.gmra.mxu0 %v988
        %v1002 = vpop.f32.mrf.mxu0
        %v1003 = vadd.f32 %v900, %v1002
        %v1004 = vpop.f32.mrf.mxu0
        %1005 = vdwg.mxu0
        %v1007 = vunpack.c.l.b16 %v905
        %v1008 = vpack.c.b16 %v1007, %v1007
        %1009 = vrot.lane.b32.xlu0 %v1008, 96
        %v1010 = vpop.permute.xlu0 %1009
        %v1012 = vsel %vm914, %v905, 0
        %v1015 = vsel %vm914, %v1010, 0
        %1017 = vmatpush.bf16.xpose.msra.mxu0 0
        %1018 = vmatpush.bf16.xpose.msra.mxu0 0
        %1019 = vmatpush.bf16.xpose.msra.mxu0 0
        %1020 = vmatpush.bf16.xpose.msra.mxu0 0
        %1021 = vmatpush.bf16.xpose.msra.mxu0 0
        %1022 = vmatpush.bf16.xpose.msra.mxu0 0
        %1023 = vmatpush.bf16.xpose.msra.mxu0 0
        %1024 = vmatpush.bf16.xpose.msra.mxu0 %v1015
        %1025 = vmatmul.bf16.gmra.mxu0 %v1012
        %v1026 = vpop.f32.mrf.mxu0
        %v1027 = vadd.f32 %v900, %v1026
        %v1028 = vpop.f32.mrf.mxu0
        %1029 = vdwg.mxu0
        %v1031 = vunpack.c.l.b16 %v906
        %v1032 = vpack.c.b16 %v1031, %v1031
        %1033 = vrot.lane.b32.xlu0 %v1032, 96
        %v1034 = vpop.permute.xlu0 %1033
        %v1036 = vsel %vm914, %v906, 0
        %v1039 = vsel %vm914, %v1034, 0
        %1041 = vmatpush.bf16.xpose.msra.mxu0 0
        %1042 = vmatpush.bf16.xpose.msra.mxu0 0
        %1043 = vmatpush.bf16.xpose.msra.mxu0 0
        %1044 = vmatpush.bf16.xpose.msra.mxu0 0
        %1045 = vmatpush.bf16.xpose.msra.mxu0 0
        %1046 = vmatpush.bf16.xpose.msra.mxu0 0
        %1047 = vmatpush.bf16.xpose.msra.mxu0 0
        %1048 = vmatpush.bf16.xpose.msra.mxu0 %v1039
        %1049 = vmatmul.bf16.gmra.mxu0 %v1036
        %v1050 = vpop.f32.mrf.mxu0
        %v1051 = vadd.f32 %v900, %v1050
        %v1052 = vpop.f32.mrf.mxu0
        %1053 = vdwg.mxu0
        %v1055 = vunpack.c.l.b16 %v907
        %v1056 = vpack.c.b16 %v1055, %v1055
        %1057 = vrot.lane.b32.xlu0 %v1056, 96
        %v1058 = vpop.permute.xlu0 %1057
        %v1060 = vsel %vm914, %v907, 0
        %v1063 = vsel %vm914, %v1058, 0
        %1065 = vmatpush.bf16.xpose.msra.mxu0 0
        %1066 = vmatpush.bf16.xpose.msra.mxu0 0
        %1067 = vmatpush.bf16.xpose.msra.mxu0 0
        %1068 = vmatpush.bf16.xpose.msra.mxu0 0
        %1069 = vmatpush.bf16.xpose.msra.mxu0 0
        %1070 = vmatpush.bf16.xpose.msra.mxu0 0
        %1071 = vmatpush.bf16.xpose.msra.mxu0 0
        %1072 = vmatpush.bf16.xpose.msra.mxu0 %v1063
        %1073 = vmatmul.bf16.gmra.mxu0 %v1060
        %v1074 = vpop.f32.mrf.mxu0
        %v1075 = vadd.f32 %v900, %v1074
        %v1076 = vpop.f32.mrf.mxu0
        %1077 = vdwg.mxu0
        %v1079 = vunpack.c.l.b16 %v908
        %v1080 = vpack.c.b16 %v1079, %v1079
        %1081 = vrot.lane.b32.xlu0 %v1080, 96
        %v1082 = vpop.permute.xlu0 %1081
        %v1084 = vsel %vm914, %v908, 0
        %v1087 = vsel %vm914, %v1082, 0
        %1089 = vmatpush.bf16.xpose.msra.mxu0 0
        %1090 = vmatpush.bf16.xpose.msra.mxu0 0
        %1091 = vmatpush.bf16.xpose.msra.mxu0 0
        %1092 = vmatpush.bf16.xpose.msra.mxu0 0
        %1093 = vmatpush.bf16.xpose.msra.mxu0 0
        %1094 = vmatpush.bf16.xpose.msra.mxu0 0
        %1095 = vmatpush.bf16.xpose.msra.mxu0 0
        %1096 = vmatpush.bf16.xpose.msra.mxu0 %v1087
        %1097 = vmatmul.bf16.gmra.mxu0 %v1084
        %v1098 = vpop.f32.mrf.mxu0
        %v1099 = vadd.f32 %v900, %v1098
        %v1100 = vpop.f32.mrf.mxu0
        %1101 = vdwg.mxu0
        %v1102 = vsel %vm914, %v931, -inf
        %1103 = vmax.xlane.f32.xlu0 %v1102
        %v1104 = vpop.xlane.xlu0 %1103
        %v1105 = vsel %vm914, %v955, -inf
        %1106 = vmax.xlane.f32.xlu0 %v1105
        %v1107 = vpop.xlane.xlu0 %1106
        %v1108 = vsel %vm914, %v979, -inf
        %1109 = vmax.xlane.f32.xlu0 %v1108
        %v1110 = vpop.xlane.xlu0 %1109
        %v1111 = vsel %vm914, %v1003, -inf
        %1112 = vmax.xlane.f32.xlu0 %v1111
        %v1113 = vpop.xlane.xlu0 %1112
        %v1114 = vsel %vm914, %v1027, -inf
        %1115 = vmax.xlane.f32.xlu0 %v1114
        %v1116 = vpop.xlane.xlu0 %1115
        %v1117 = vsel %vm914, %v1051, -inf
        %1118 = vmax.xlane.f32.xlu0 %v1117
        %v1119 = vpop.xlane.xlu0 %1118
        %v1120 = vsel %vm914, %v1075, -inf
        %1121 = vmax.xlane.f32.xlu0 %v1120
        %v1122 = vpop.xlane.xlu0 %1121
        %v1123 = vsel %vm914, %v1099, -inf
        %1124 = vmax.xlane.f32.xlu0 %v1123
        %v1125 = vpop.xlane.xlu0 %1124
        %v1126 = vsub.f32 %v931, %v1104
        %v1127 = vsub.f32 %v955, %v1107
        %v1128 = vsub.f32 %v979, %v1110
        %v1129 = vsub.f32 %v1003, %v1113
        %v1130 = vsub.f32 %v1027, %v1116
        %v1131 = vsub.f32 %v1051, %v1119
        %v1132 = vsub.f32 %v1075, %v1122
        %v1133 = vsub.f32 %v1099, %v1125
        %v1134 = vmul.f32 %v1126, 1.442695
        %v1135 = vpow.pop %v1134
        %v1136 = vmul.f32 %v1127, 1.442695
        %v1137 = vpow.pop %v1136
        %v1138 = vmul.f32 %v1128, 1.442695
        %v1139 = vpow.pop %v1138
        %v1140 = vmul.f32 %v1129, 1.442695
        %v1141 = vpow.pop %v1140
        %v1142 = vmul.f32 %v1130, 1.442695
        %v1143 = vpow.pop %v1142
        %v1144 = vmul.f32 %v1131, 1.442695
        %v1145 = vpow.pop %v1144
        %v1146 = vmul.f32 %v1132, 1.442695
        %v1147 = vpow.pop %v1146
        %v1148 = vmul.f32 %v1133, 1.442695
        %v1149 = vpow.pop %v1148
        %v1150 = vsel %vm914, %v1135, 0.0
        %1151 = vadd.xlane.f32.xlu0 %v1150
        %v1152 = vpop.xlane.xlu0 %1151
        %v1153 = vsel %vm914, %v1137, 0.0
        %1154 = vadd.xlane.f32.xlu0 %v1153
        %v1155 = vpop.xlane.xlu0 %1154
        %v1156 = vsel %vm914, %v1139, 0.0
        %1157 = vadd.xlane.f32.xlu0 %v1156
        %v1158 = vpop.xlane.xlu0 %1157
        %v1159 = vsel %vm914, %v1141, 0.0
        %1160 = vadd.xlane.f32.xlu0 %v1159
        %v1161 = vpop.xlane.xlu0 %1160
        %v1162 = vsel %vm914, %v1143, 0.0
        %1163 = vadd.xlane.f32.xlu0 %v1162
        %v1164 = vpop.xlane.xlu0 %1163
        %v1165 = vsel %vm914, %v1145, 0.0
        %1166 = vadd.xlane.f32.xlu0 %v1165
        %v1167 = vpop.xlane.xlu0 %1166
        %v1168 = vsel %vm914, %v1147, 0.0
        %1169 = vadd.xlane.f32.xlu0 %v1168
        %v1170 = vpop.xlane.xlu0 %1169
        %v1171 = vsel %vm914, %v1149, 0.0
        %1172 = vadd.xlane.f32.xlu0 %v1171
        %v1173 = vpop.xlane.xlu0 %1172
        %v1174 = vrcp.pop %v1152
        %v1175 = vrcp.pop %v1155
        %v1176 = vrcp.pop %v1158
        %v1177 = vrcp.pop %v1161
        %v1178 = vrcp.pop %v1164
        %v1179 = vrcp.pop %v1167
        %v1180 = vrcp.pop %v1170
        %v1181 = vrcp.pop %v1173
        %v1182 = vmul.f32 %v1135, %v1174
        %v1183 = vmul.f32 %v1137, %v1175
        %v1184 = vmul.f32 %v1139, %v1176
        %v1185 = vmul.f32 %v1141, %v1177
        %v1186 = vmul.f32 %v1143, %v1178
        %v1187 = vmul.f32 %v1145, %v1179
        %v1188 = vmul.f32 %v1147, %v1180
        %v1189 = vmul.f32 %v1149, %v1181
        %v1190 = vpack.c.bf16 %v1182, %v1182
        %v1191 = vpack.c.bf16 %v1183, %v1183
        %v1192 = vpack.c.bf16 %v1184, %v1184
        %v1193 = vpack.c.bf16 %v1185, %v1185
        %v1194 = vpack.c.bf16 %v1186, %v1186
        %v1195 = vpack.c.bf16 %v1187, %v1187
        %v1196 = vpack.c.bf16 %v1188, %v1188
        %v1197 = vpack.c.bf16 %v1189, %v1189
        %1198 = vrot.lane.b32.xlu0 %v911, 64
        %v1199 = vpop.permute.xlu0 %1198
        %v1201 = vsel %vm914, %v1190, 0
        %vm1203 = vcmask 1043456
        %v1205 = vsel %vm1203, %v1199, 0
        %1207 = vmatpush.bf16.msra.mxu0 0
        %1208 = vmatpush.bf16.msra.mxu0 0
        %1209 = vmatpush.bf16.msra.mxu0 0
        %1210 = vmatpush.bf16.msra.mxu0 0
        %1211 = vmatpush.bf16.msra.mxu0 0
        %1212 = vmatpush.bf16.msra.mxu0 0
        %1213 = vmatpush.bf16.msra.mxu0 0
        %1214 = vmatpush.bf16.msra.mxu0 %v1205
        %1215 = vmatmul.bf16.gmra.mxu0 %v1201
        %v1216 = vpop.f32.mrf.mxu0
        %v1217 = vadd.f32 0.0, %v1216
        %v1218 = vpop.f32.mrf.mxu0
        %1219 = vdwg.mxu0
        %1220 = vrot.lane.b32.xlu0 %v936, 64
        %v1221 = vpop.permute.xlu0 %1220
        %v1223 = vsel %vm914, %v1191, 0
        %v1226 = vsel %vm1203, %v1221, 0
        %1228 = vmatpush.bf16.msra.mxu0 0
        %1229 = vmatpush.bf16.msra.mxu0 0
        %1230 = vmatpush.bf16.msra.mxu0 0
        %1231 = vmatpush.bf16.msra.mxu0 0
        %1232 = vmatpush.bf16.msra.mxu0 0
        %1233 = vmatpush.bf16.msra.mxu0 0
        %1234 = vmatpush.bf16.msra.mxu0 0
        %1235 = vmatpush.bf16.msra.mxu0 %v1226
        %1236 = vmatmul.bf16.gmra.mxu0 %v1223
        %v1237 = vpop.f32.mrf.mxu0
        %v1238 = vadd.f32 0.0, %v1237
        %v1239 = vpop.f32.mrf.mxu0
        %1240 = vdwg.mxu0
        %1241 = vrot.lane.b32.xlu0 %v960, 64
        %v1242 = vpop.permute.xlu0 %1241
        %v1244 = vsel %vm914, %v1192, 0
        %v1247 = vsel %vm1203, %v1242, 0
        %1249 = vmatpush.bf16.msra.mxu0 0
        %1250 = vmatpush.bf16.msra.mxu0 0
        %1251 = vmatpush.bf16.msra.mxu0 0
        %1252 = vmatpush.bf16.msra.mxu0 0
        %1253 = vmatpush.bf16.msra.mxu0 0
        %1254 = vmatpush.bf16.msra.mxu0 0
        %1255 = vmatpush.bf16.msra.mxu0 0
        %1256 = vmatpush.bf16.msra.mxu0 %v1247
        %1257 = vmatmul.bf16.gmra.mxu0 %v1244
        %v1258 = vpop.f32.mrf.mxu0
        %v1259 = vadd.f32 0.0, %v1258
        %v1260 = vpop.f32.mrf.mxu0
        %1261 = vdwg.mxu0
        %1262 = vrot.lane.b32.xlu0 %v984, 64
        %v1263 = vpop.permute.xlu0 %1262
        %v1265 = vsel %vm914, %v1193, 0
        %v1268 = vsel %vm1203, %v1263, 0
        %1270 = vmatpush.bf16.msra.mxu0 0
        %1271 = vmatpush.bf16.msra.mxu0 0
        %1272 = vmatpush.bf16.msra.mxu0 0
        %1273 = vmatpush.bf16.msra.mxu0 0
        %1274 = vmatpush.bf16.msra.mxu0 0
        %1275 = vmatpush.bf16.msra.mxu0 0
        %1276 = vmatpush.bf16.msra.mxu0 0
        %1277 = vmatpush.bf16.msra.mxu0 %v1268
        %1278 = vmatmul.bf16.gmra.mxu0 %v1265
        %v1279 = vpop.f32.mrf.mxu0
        %v1280 = vadd.f32 0.0, %v1279
        %v1281 = vpop.f32.mrf.mxu0
        %1282 = vdwg.mxu0
        %1283 = vrot.lane.b32.xlu0 %v1008, 64
        %v1284 = vpop.permute.xlu0 %1283
        %v1286 = vsel %vm914, %v1194, 0
        %v1289 = vsel %vm1203, %v1284, 0
        %1291 = vmatpush.bf16.msra.mxu0 0
        %1292 = vmatpush.bf16.msra.mxu0 0
        %1293 = vmatpush.bf16.msra.mxu0 0
        %1294 = vmatpush.bf16.msra.mxu0 0
        %1295 = vmatpush.bf16.msra.mxu0 0
        %1296 = vmatpush.bf16.msra.mxu0 0
        %1297 = vmatpush.bf16.msra.mxu0 0
        %1298 = vmatpush.bf16.msra.mxu0 %v1289
        %1299 = vmatmul.bf16.gmra.mxu0 %v1286
        %v1300 = vpop.f32.mrf.mxu0
        %v1301 = vadd.f32 0.0, %v1300
        %v1302 = vpop.f32.mrf.mxu0
        %1303 = vdwg.mxu0
        %1304 = vrot.lane.b32.xlu0 %v1032, 64
        %v1305 = vpop.permute.xlu0 %1304
        %v1307 = vsel %vm914, %v1195, 0
        %v1310 = vsel %vm1203, %v1305, 0
        %1312 = vmatpush.bf16.msra.mxu0 0
        %1313 = vmatpush.bf16.msra.mxu0 0
        %1314 = vmatpush.bf16.msra.mxu0 0
        %1315 = vmatpush.bf16.msra.mxu0 0
        %1316 = vmatpush.bf16.msra.mxu0 0
        %1317 = vmatpush.bf16.msra.mxu0 0
        %1318 = vmatpush.bf16.msra.mxu0 0
        %1319 = vmatpush.bf16.msra.mxu0 %v1310
        %1320 = vmatmul.bf16.gmra.mxu0 %v1307
        %v1321 = vpop.f32.mrf.mxu0
        %v1322 = vadd.f32 0.0, %v1321
        %v1323 = vpop.f32.mrf.mxu0
        %1324 = vdwg.mxu0
        %1325 = vrot.lane.b32.xlu0 %v1056, 64
        %v1326 = vpop.permute.xlu0 %1325
        %v1328 = vsel %vm914, %v1196, 0
        %v1331 = vsel %vm1203, %v1326, 0
        %1333 = vmatpush.bf16.msra.mxu0 0
        %1334 = vmatpush.bf16.msra.mxu0 0
        %1335 = vmatpush.bf16.msra.mxu0 0
        %1336 = vmatpush.bf16.msra.mxu0 0
        %1337 = vmatpush.bf16.msra.mxu0 0
        %1338 = vmatpush.bf16.msra.mxu0 0
        %1339 = vmatpush.bf16.msra.mxu0 0
        %1340 = vmatpush.bf16.msra.mxu0 %v1331
        %1341 = vmatmul.bf16.gmra.mxu0 %v1328
        %v1342 = vpop.f32.mrf.mxu0
        %v1343 = vadd.f32 0.0, %v1342
        %v1344 = vpop.f32.mrf.mxu0
        %1345 = vdwg.mxu0
        %1346 = vrot.lane.b32.xlu0 %v1080, 64
        %v1347 = vpop.permute.xlu0 %1346
        %v1349 = vsel %vm914, %v1197, 0
        %v1352 = vsel %vm1203, %v1347, 0
        %1354 = vmatpush.bf16.msra.mxu0 0
        %1355 = vmatpush.bf16.msra.mxu0 0
        %1356 = vmatpush.bf16.msra.mxu0 0
        %1357 = vmatpush.bf16.msra.mxu0 0
        %1358 = vmatpush.bf16.msra.mxu0 0
        %1359 = vmatpush.bf16.msra.mxu0 0
        %1360 = vmatpush.bf16.msra.mxu0 0
        %1361 = vmatpush.bf16.msra.mxu0 %v1352
        %1362 = vmatmul.bf16.gmra.mxu0 %v1349
        %v1363 = vpop.f32.mrf.mxu0
        %v1364 = vadd.f32 0.0, %v1363
        %v1365 = vpop.f32.mrf.mxu0
        %1366 = vdwg.mxu0
        %1369 = vrot.lane.b32.xlu0 %v1259, 8
        %v1370 = vpop.permute.xlu0 %1369
        %1371 = vrot.lane.b32.xlu0 %v1280, 8
        %v1372 = vpop.permute.xlu0 %1371
        %1377 = vrot.lane.b32.xlu0 %v1301, 16
        %v1378 = vpop.permute.xlu0 %1377
        %1379 = vrot.lane.b32.xlu0 %v1322, 16
        %v1380 = vpop.permute.xlu0 %1379
        %1385 = vrot.lane.b32.xlu0 %v1343, 24
        %v1386 = vpop.permute.xlu0 %1385
        %1387 = vrot.lane.b32.xlu0 %v1364, 24
        %v1388 = vpop.permute.xlu0 %1387
        %v1391 = vsel %vm914, %v1217, %v1370
        %v1392 = vsel %vm914, %v1238, %v1372
        %vm1393 = vcmask 130048
        %v1394 = vsel %vm1393, %v1391, %v1378
        %v1395 = vsel %vm1393, %v1392, %v1380
        %vm1396 = vcmask 195584
        %v1397 = vsel %vm1396, %v1394, %v1386
        %v1398 = vsel %vm1396, %v1395, %v1388
        %v1399 = vpack.c.bf16 %v1398, %v1397
        %v1400 = vld [vmem:[%s681] sm:$0xf]
        %v1401 = vld [vmem:[%s681 + $0x4] sm:$0xf]
        %v1402 = vld [vmem:[%s681 + $0x8] sm:$0xf]
        %v1403 = vld [vmem:[%s681 + $0xc] sm:$0xf]
        %v1404 = vld [vmem:[%s684] sm:$0x1]
        %v1406 = vperm.slane %v1404, 0
        %v1412 = vunpack.c.l.b16 %v1400
        %v1413 = vunpack.c.l.b16 %v1401
        %v1414 = vunpack.c.l.b16 %v1402
        %v1415 = vunpack.c.l.b16 %v1403
        %v1416 = vpack.c.b16 %v1413, %v1412
        %v1417 = vpack.c.b16 %v1415, %v1414
        %v1421 = vsel %vm775, %v1399, 0
        %1423 = vmatpush.bf16.msra.mxu0 0
        %1424 = vmatpush.bf16.msra.mxu0 0
        %1425 = vmatpush.bf16.msra.mxu0 0
        %1426 = vmatpush.bf16.msra.mxu0 0
        %1427 = vmatpush.bf16.msra.mxu0 0
        %1428 = vmatpush.bf16.msra.mxu0 0
        %1429 = vmatpush.bf16.msra.mxu0 %v1417
        %1430 = vmatpush.bf16.msra.mxu0 %v1416
        %1431 = vmatmul.bf16.gmra.mxu0 %v1421
        %v1432 = vpop.f32.mrf.mxu0
        %v1433 = vadd.f32 %v1406, %v1432
        %v1434 = vpop.f32.mrf.mxu0
        %v1435 = vadd.f32 %v1406, %v1434
        %1436 = vdwg.mxu0
        %v1437 = vadd.f32 %v835, %v1433
        %v1438 = vadd.f32 %v836, %v1435
        %v1439 = vld [vmem:[%s687] sm:$0x1]
        %v1440 = vld [vmem:[%s690] sm:$0x1]
        %v1441 = vsel %vm775, %v1437, 0.0
        %1442 = vadd.xlane.f32.xlu0 %v1441
        %v1443 = vpop.xlane.xlu0 %1442
        %v1444 = vsel %vm775, %v1438, 0.0
        %1445 = vadd.xlane.f32.xlu0 %v1444
        %v1446 = vpop.xlane.xlu0 %1445
        %v1447 = vmul.f32 %v1443, %v788
        %v1448 = vmul.f32 %v1446, %v788
        %v1449 = vsub.f32 %v1437, %v1447
        %v1450 = vsub.f32 %v1438, %v1448
        %v1451 = vmul.f32 %v1449, %v1449
        %v1452 = vmul.f32 %v1450, %v1450
        %v1453 = vsel %vm775, %v1451, 0.0
        %1454 = vadd.xlane.f32.xlu0 %v1453
        %v1455 = vpop.xlane.xlu0 %1454
        %v1456 = vsel %vm775, %v1452, 0.0
        %1457 = vadd.xlane.f32.xlu0 %v1456
        %v1458 = vpop.xlane.xlu0 %1457
        %v1459 = vmul.f32 %v1455, %v788
        %v1460 = vmul.f32 %v1458, %v788
        %v1461 = vadd.f32 %v1459, 1e-05
        %v1462 = vadd.f32 %v1460, 1e-05
        %v1463 = vrsqrt.pop %v1461
        %v1464 = vmul.f32 %v1463, %v1461
        %v1465 = vmul.f32 %v1464, %v1463
        %v1466 = vmul.f32 0.5, %v1465
        %v1467 = vsub.f32 1.5, %v1466
        %v1468 = vmul.f32 %v1463, %v1467
        %vm1469 = vweird.f32 %v1461
        %vm1470 = vweird.f32 %v1463
        %vm1471 = vmor %vm1469, %vm1470
        %v1472 = vsel %vm1471, %v1463, %v1468
        %v1473 = vrsqrt.pop %v1462
        %v1474 = vmul.f32 %v1473, %v1462
        %v1475 = vmul.f32 %v1474, %v1473
        %v1476 = vmul.f32 0.5, %v1475
        %v1477 = vsub.f32 1.5, %v1476
        %v1478 = vmul.f32 %v1473, %v1477
        %vm1479 = vweird.f32 %v1462
        %vm1480 = vweird.f32 %v1473
        %vm1481 = vmor %vm1479, %vm1480
        %v1482 = vsel %vm1481, %v1473, %v1478
        %v1483 = vmul.f32 %v1449, %v1472
        %v1484 = vmul.f32 %v1450, %v1482
        %v1486 = vperm.slane %v1439, 0
        %v1488 = vmul.f32 %v1483, %v1486
        %v1489 = vmul.f32 %v1484, %v1486
        %v1491 = vperm.slane %v1440, 0
        %v1493 = vadd.f32 %v1488, %v1491
        %v1494 = vadd.f32 %v1489, %v1491
        %v1495 = vpack.c.bf16 %v1494, %v1493
        %v1496 = vld [vmem:[%s695] sm:$0xf]
        %v1497 = vld [vmem:[%s695 + $0x4] sm:$0xf]
        %v1498 = vld [vmem:[%s695 + $0x8] sm:$0xf]
        %v1499 = vld [vmem:[%s695 + $0xc] sm:$0xf]
        %v1500 = vld [vmem:[%s698] sm:$0x1]
        %v1502 = vperm.slane %v1500, 0
        %v1508 = vunpack.c.l.b16 %v1496
        %v1509 = vunpack.c.l.b16 %v1497
        %v1510 = vunpack.c.l.b16 %v1498
        %v1511 = vunpack.c.l.b16 %v1499
        %v1512 = vpack.c.b16 %v1509, %v1508
        %v1513 = vpack.c.b16 %v1511, %v1510
        %v1517 = vsel %vm775, %v1495, 0
        %1519 = vmatpush.bf16.msra.mxu0 0
        %1520 = vmatpush.bf16.msra.mxu0 0
        %1521 = vmatpush.bf16.msra.mxu0 0
        %1522 = vmatpush.bf16.msra.mxu0 0
        %1523 = vmatpush.bf16.msra.mxu0 0
        %1524 = vmatpush.bf16.msra.mxu0 0
        %1525 = vmatpush.bf16.msra.mxu0 %v1513
        %1526 = vmatpush.bf16.msra.mxu0 %v1512
        %1527 = vmatmul.bf16.gmra.mxu0 %v1517
        %v1528 = vpop.f32.mrf.mxu0
        %v1529 = vadd.f32 %v1502, %v1528
        %v1530 = vpop.f32.mrf.mxu0
        %v1531 = vadd.f32 %v1502, %v1530
        %1532 = vdwg.mxu0
        %v1533 = vmul.f32 %v1529, 0.5
        %v1534 = vmul.f32 %v1531, 0.5
        %v1535 = vmul.f32 %v1529, 0.044715
        %v1536 = vmul.f32 %v1531, 0.044715
        %v1537 = vmul.f32 %v1535, %v1529
        %v1538 = vmul.f32 %v1536, %v1531
        %v1539 = vmul.f32 %v1537, %v1529
        %v1540 = vmul.f32 %v1538, %v1531
        %v1541 = vadd.f32 %v1529, %v1539
        %v1542 = vadd.f32 %v1531, %v1540
        %v1543 = vmul.f32 %v1541, 0.7978846
        %v1544 = vmul.f32 %v1542, 0.7978846
        %v1545 = vtanh.pop %v1543
        %v1546 = vtanh.pop %v1544
        %v1547 = vadd.f32 %v1545, 1.0
        %v1548 = vadd.f32 %v1546, 1.0
        %v1549 = vmul.f32 %v1533, %v1547
        %v1550 = vmul.f32 %v1534, %v1548
        %v1551 = vpack.c.bf16 %v1550, %v1549
        %v1552 = vld [vmem:[%s703] sm:$0xf]
        %v1553 = vld [vmem:[%s703 + $0x4] sm:$0xf]
        %v1554 = vld [vmem:[%s703 + $0x8] sm:$0xf]
        %v1555 = vld [vmem:[%s703 + $0xc] sm:$0xf]
        %v1556 = vld [vmem:[%s703 + $0x10] sm:$0xf]
        %v1557 = vld [vmem:[%s703 + $0x14] sm:$0xf]
        %v1558 = vld [vmem:[%s703 + $0x18] sm:$0xf]
        %v1559 = vld [vmem:[%s703 + $0x1c] sm:$0xf]
        %v1560 = vld [vmem:[%s703 + $0x20] sm:$0xf]
        %v1561 = vld [vmem:[%s703 + $0x24] sm:$0xf]
        %v1562 = vld [vmem:[%s703 + $0x28] sm:$0xf]
        %v1563 = vld [vmem:[%s703 + $0x2c] sm:$0xf]
        %v1564 = vld [vmem:[%s703 + $0x30] sm:$0xf]
        %v1565 = vld [vmem:[%s703 + $0x34] sm:$0xf]
        %v1566 = vld [vmem:[%s703 + $0x38] sm:$0xf]
        %v1567 = vld [vmem:[%s703 + $0x3c] sm:$0xf]
        %v1584 = vunpack.c.l.b16 %v1552
        %v1585 = vunpack.c.l.b16 %v1553
        %v1586 = vunpack.c.l.b16 %v1554
        %v1587 = vunpack.c.l.b16 %v1555
        %v1588 = vunpack.c.l.b16 %v1556
        %v1589 = vunpack.c.l.b16 %v1557
        %v1590 = vunpack.c.l.b16 %v1558
        %v1591 = vunpack.c.l.b16 %v1559
        %v1592 = vunpack.c.l.b16 %v1560
        %v1593 = vunpack.c.l.b16 %v1561
        %v1594 = vunpack.c.l.b16 %v1562
        %v1595 = vunpack.c.l.b16 %v1563
        %v1596 = vunpack.c.l.b16 %v1564
        %v1597 = vunpack.c.l.b16 %v1565
        %v1598 = vunpack.c.l.b16 %v1566
        %v1599 = vunpack.c.l.b16 %v1567
        %v1600 = vpack.c.b16 %v1585, %v1584
        %v1601 = vpack.c.b16 %v1587, %v1586
        %v1602 = vpack.c.b16 %v1589, %v1588
        %v1603 = vpack.c.b16 %v1591, %v1590
        %v1604 = vpack.c.b16 %v1593, %v1592
        %v1605 = vpack.c.b16 %v1595, %v1594
        %v1606 = vpack.c.b16 %v1597, %v1596
        %v1607 = vpack.c.b16 %v1599, %v1598
        %1616 = vmatpush.bf16.msra.mxu0 %v1607
        %1617 = vmatpush.bf16.msra.mxu0 %v1606
        %1618 = vmatpush.bf16.msra.mxu0 %v1605
        %1619 = vmatpush.bf16.msra.mxu0 %v1604
        %1620 = vmatpush.bf16.msra.mxu0 %v1603
        %1621 = vmatpush.bf16.msra.mxu0 %v1602
        %1622 = vmatpush.bf16.msra.mxu0 %v1601
        %1623 = vmatpush.bf16.msra.mxu0 %v1600
        %1624 = vmatmul.bf16.gmra.mxu0 %v1551
        %v1625 = vpop.f32.mrf.mxu0
        %v1626 = vadd.f32 0.0, %v1625
        %v1627 = vpop.f32.mrf.mxu0
        %v1628 = vadd.f32 0.0, %v1627
        %1629 = vdwg.mxu0
        %v1630 = vadd.f32 %v1493, %v1626
        %v1631 = vadd.f32 %v1494, %v1628
        %v1632 = vld [vmem:[%s706] sm:$0x1]
        %v1634 = vperm.slane %v1632, 0
        %v1636 = vadd.f32 %v1630, %v1634
        %v1637 = vadd.f32 %v1631, %v1634
        %1638 = vst.msk [vmem:[#allocation2] sm:$0xff] %vm775, %v1636
        %1639 = vst.msk [vmem:[#allocation2 + $0x8] sm:$0xff] %vm775, %v1637
        %p1640 = scmp.eq.s32.totalorder %s29, 1
        // Predicated region
        $region93: #{tpu_custom_call.1} parent=87 // pred_check
          %p1641 = pneg %p1640
        $region94: #{tpu_custom_call.1} parent=87 // pred_check_branch
          %1643 = sbr.rel (%p1641) target = $region96
        $region95: #{tpu_custom_call.1} parent=87 // pred_region
          %v1644 = vpack.c.bf16 %v1637, %v1636
          %v1645 = vld [vmem:[%s15] sm:$0xf]
          %v1646 = vld [vmem:[%s15 + $0x4] sm:$0xf]
          %v1647 = vld [vmem:[%s15 + $0x8] sm:$0xf]
          %v1648 = vld [vmem:[%s15 + $0xc] sm:$0xf]
          %v1649 = vld [vmem:[%s16] sm:$0x1]
          %v1651 = vperm.slane %v1649, 0
          %v1657 = vunpack.c.l.b16 %v1645
          %v1658 = vunpack.c.l.b16 %v1646
          %v1659 = vunpack.c.l.b16 %v1647
          %v1660 = vunpack.c.l.b16 %v1648
          %v1661 = vpack.c.b16 %v1658, %v1657
          %v1662 = vpack.c.b16 %v1660, %v1659
          %v1666 = vsel %vm775, %v1644, 0
          %1668 = vmatpush.bf16.msra.mxu0 0
          %1669 = vmatpush.bf16.msra.mxu0 0
          %1670 = vmatpush.bf16.msra.mxu0 0
          %1671 = vmatpush.bf16.msra.mxu0 0
          %1672 = vmatpush.bf16.msra.mxu0 0
          %1673 = vmatpush.bf16.msra.mxu0 0
          %1674 = vmatpush.bf16.msra.mxu0 %v1662
          %1675 = vmatpush.bf16.msra.mxu0 %v1661
          %1676 = vmatmul.bf16.gmra.mxu0 %v1666
          %v1677 = vpop.f32.mrf.mxu0
          %v1678 = vadd.f32 %v1651, %v1677
          %v1679 = vpop.f32.mrf.mxu0
          %v1680 = vadd.f32 %v1651, %v1679
          %1681 = vdwg.mxu0
          %1682 = vst [vmem:[#allocation3] sm:$0xff] %v1678
          %1683 = vst [vmem:[#allocation3 + $0x8] sm:$0xff] %v1680
        $region96: #{tpu_custom_call.1} parent=87 // pred_fallthru
          _
        // Predicated region
        $region97: #{tpu_custom_call.1} parent=87 // pred_check
          %p1684 = pneg %p459
        $region98: #{tpu_custom_call.1} parent=87 // pred_check_branch
          %1686 = sbr.rel (%p1684) target = $region100
        $region99: #{tpu_custom_call.1} parent=87 // pred_region
          %1688 = vsyncadd [#allocation4], 0
          %s1689 = sshll.u32 [#allocation3], 4
          %s1690 = int_to_ptr.vmem [resolvable:$true] %s1689
          %s1691 = sshll.u32 %s17, 4
          %s1692 = int_to_ptr.hbm [resolvable:$true] %s1691
          %1697 = dma.vmem_to_hbm [thread:$0]  %s1690, 256, %s1692, [#allocation4], 128, 128, 8
        $region100: #{tpu_custom_call.1} parent=87 // pred_fallthru
          _
        // Predicated region
        $region101: #{tpu_custom_call.1} parent=87 // pred_check
          %p1698 = pneg %p459
        $region102: #{tpu_custom_call.1} parent=87 // pred_check_branch
          %1700 = sbr.rel (%p1698) target = $region104
        $region103: #{tpu_custom_call.1} parent=87 // pred_region
          %1702 = dma.done [#allocation4], 256
        $region104: #{tpu_custom_call.1} parent=87 // pred_fallthru
          _
      $region88: #{tpu_custom_call.1} parent=5 // pred_fallthru
        _
      %p1703 = scmp.le.s32.totalorder 2, %s24
      // Predicated region
      $region105: #{tpu_custom_call.1} parent=5 // pred_check
        %p1704 = pneg %p1703
      $region106: #{tpu_custom_call.1} parent=5 // pred_check_branch
        %1706 = sbr.rel (%p1704) target = $region108
      $region107: #{tpu_custom_call.1} parent=5 // pred_region
        %s1707 = ssub.s32 %s24, 2
      $region108: #{tpu_custom_call.1} parent=5 // pred_fallthru
        _
    $region6: #{tpu_custom_call.1} parent=1 // loop_footer
      %s28 = sadd.s32 1, %s24
    $region7: #{tpu_custom_call.1} parent=1 // loop_footer_branch
      %23 = sbr.rel target = $region3
    $region8: #{tpu_custom_call.1} parent=1 // loop_exit
      _
    %1708 = vsyncpa [#allocation4], 1
    %s1709 = scalar_lea.sflag [#allocation4], 1
    %1710 = vsyncpa %s1709, 1

</llo_original>
